<compile_context>
chip_gen: v7x
topology: tpu7x:2x2x1
jax: 0.10.0
libtpu: 0.0.40
codegen_flags: <defaults>
</compile_context>

<pallas_src>
import math
import functools

import jax
import jax.numpy as jnp
from jax import lax
from jax.experimental import pallas as pl
from jax.experimental.pallas import tpu as pltpu


def _attention_layer_kernel(x_ref, wqkvT_ref, bqkv_ref, woT_ref, bo_ref,
                            gamma_ref, beta_ref,
                            y_ref, aw_ref,
                            *, num_heads: int, head_dim: int, eps: float,
                            compute_dtype):
    """One grid step == one batch element; all heads handled in-register."""
    D = head_dim
    S, E = x_ref.shape[1], x_ref.shape[2]
    scale = 1.0 / math.sqrt(D)

    x = x_ref[0]                                            # (S, E), input dtype
    xc = x.astype(compute_dtype)

    attn_acc = jnp.zeros((S, E), jnp.float32)               # sum_h (o_h @ Wo_h)
    aw_acc = jnp.zeros((S, S), jnp.float32)                 # sum_h softmax_h

    # Static unroll over heads: every matmul stays a clean 2-D MXU op with
    # statically sliced per-head weights -- no in-kernel reshapes/transposes.
    for h in range(num_heads):
        wqkv = wqkvT_ref[h].astype(compute_dtype)           # (E, 3D)
        qkv = jnp.dot(xc, wqkv,
                      preferred_element_type=jnp.float32) + bqkv_ref[h]  # (S, 3D)
        qh = qkv[:, :D] * scale                             # (S, D)
        kh = qkv[:, D:2 * D]                                # (S, D)
        vh = qkv[:, 2 * D:]                                 # (S, D)

        # scores = q @ k^T without materializing a transpose (contract last axes).
        s = lax.dot_general(qh.astype(compute_dtype), kh.astype(compute_dtype),
                            (((1,), (1,)), ((), ())),
                            preferred_element_type=jnp.float32)   # (S, S)
        s = s - jnp.max(s, axis=-1, keepdims=True)
        p = jnp.exp(s)
        p = p * pl.reciprocal(jnp.sum(p, axis=-1, keepdims=True), approx=True)

        # Per-head attention output folded directly through this head's Wo rows.
        o = jnp.dot(p.astype(compute_dtype), vh.astype(compute_dtype),
                    preferred_element_type=jnp.float32)           # (S, D)
        attn_acc = attn_acc + jnp.dot(o.astype(compute_dtype),
                                      woT_ref[h].astype(compute_dtype),
                                      preferred_element_type=jnp.float32)  # (S, E)
        aw_acc = aw_acc + p

    # Residual + out-proj bias + LayerNorm, all in f32.
    y = x.astype(jnp.float32) + attn_acc + bo_ref[...]
    mean = jnp.mean(y, axis=-1, keepdims=True)
    var = jnp.mean((y - mean) ** 2, axis=-1, keepdims=True)
    y_norm = (y - mean) * lax.rsqrt(var + eps)
    y_ref[0] = (y_norm * gamma_ref[...] + beta_ref[...]).astype(y_ref.dtype)
    aw_ref[0] = (aw_acc * (1.0 / num_heads)).astype(aw_ref.dtype)


def _pack_head_params(params, num_heads: int):
    """Repack flat MHA params into per-head-blocked layouts for the kernel."""
    E = params["wqT"].shape[0]
    D = E // num_heads

    def split_cols(wT):                                    # (E, E) -> (H, E, D)
        return wT.reshape(E, num_heads, D).transpose(1, 0, 2)

    wqkvT_h = jnp.concatenate(
        [split_cols(params["wqT"]), split_cols(params["wkT"]),
         split_cols(params["wvT"])], axis=-1)              # (H, E, 3D)

    def split_bias(b):                                     # (E,) -> (H, 1, D)
        return b.reshape(num_heads, 1, D)

    bqkv_h = jnp.concatenate(
        [split_bias(params["bq"]), split_bias(params["bk"]),
         split_bias(params["bv"])], axis=-1)               # (H, 1, 3D)

    woT_h = params["woT"].reshape(num_heads, D, E)         # (H, D, E)
    return wqkvT_h, bqkv_h, woT_h


def attention_layer_pallas(x, params, num_heads: int,
                           compute_dtype=jnp.bfloat16):
    """x: (B, S, E).  Returns (y, attn_weights) like the PyTorch module."""
    B, S, E = x.shape
    assert E % num_heads == 0, "embed_dim must be divisible by num_heads"
    D = E // num_heads

    wqkvT_h, bqkv_h, woT_h = _pack_head_params(params, num_heads)
    bo, gamma, beta = params["bo"], params["gamma"], params["beta"]

    kernel = functools.partial(
        _attention_layer_kernel,
        num_heads=num_heads, head_dim=D, eps=1e-5, compute_dtype=compute_dtype)

    # VMEM budget from actual resident blocks (double-buffered per-batch tiles
    # + once-resident weights), kept under v7x's 64 MiB physical VMEM.
    f32 = 4
    per_step_bytes = f32 * (S * E + S * E + S * S)                 # x, y, aw
    weight_bytes = f32 * (num_heads * (E * 3 * D + 3 * D + D * E) + 3 * E)
    vmem_limit = int(min(max(4 * per_step_bytes + 2 * weight_bytes + (4 << 20),
                             16 << 20), 64 << 20))

    y, aw = pl.pallas_call(
        kernel,
        out_shape=(jax.ShapeDtypeStruct((B, S, E), x.dtype),
                   jax.ShapeDtypeStruct((B, S, S), jnp.float32)),
        grid_spec=pltpu.PrefetchScalarGridSpec(
            num_scalar_prefetch=0,
            grid=(B,),
            in_specs=[
                pl.BlockSpec((1, S, E), lambda b: (b, 0, 0)),              # x
                pl.BlockSpec((num_heads, E, 3 * D), lambda b: (0, 0, 0)),  # QKV cols
                pl.BlockSpec((num_heads, 1, 3 * D), lambda b: (0, 0, 0)),  # QKV bias
                pl.BlockSpec((num_heads, D, E), lambda b: (0, 0, 0)),      # Wo rows
                pl.BlockSpec((1, E), lambda b: (0, 0)),                    # bo
                pl.BlockSpec((1, E), lambda b: (0, 0)),                    # gamma
                pl.BlockSpec((1, E), lambda b: (0, 0)),                    # beta
            ],
            out_specs=[
                pl.BlockSpec((1, S, E), lambda b: (b, 0, 0)),              # y
                pl.BlockSpec((1, S, S), lambda b: (b, 0, 0)),              # attn wts
            ],
        ),
        compiler_params=pltpu.CompilerParams(
            dimension_semantics=("parallel",),
            vmem_limit_bytes=vmem_limit),
    )(x, wqkvT_h, bqkv_h, woT_h, bo, gamma, beta)
    return y, aw


def make_params(hidden_size: int, key):
    """Deterministic synthetic parameters matching nn.MultiheadAttention + LayerNorm."""
    E = hidden_size
    ks = jax.random.split(key, 4)
    # in_proj_weight: (3E, E); out_proj.weight: (E, E)   (PyTorch layout)
    in_proj_w = 0.05 * jax.random.normal(ks[0], (3 * E, E), jnp.float32)
    in_proj_b = 0.05 * jax.random.normal(ks[1], (3 * E,), jnp.float32)
    out_w = 0.05 * jax.random.normal(ks[2], (E, E), jnp.float32)
    out_b = 0.05 * jax.random.normal(ks[3], (E,), jnp.float32)
    wq, wk, wv = in_proj_w[:E], in_proj_w[E:2 * E], in_proj_w[2 * E:]
    bq, bk, bv = in_proj_b[:E], in_proj_b[E:2 * E], in_proj_b[2 * E:]
    return {
        "wqT": wq.T, "wkT": wk.T, "wvT": wv.T, "woT": out_w.T,
        "bq": bq, "bk": bk, "bv": bv,
        "bo": out_b.reshape(1, E),
        "gamma": jnp.ones((1, E), jnp.float32),
        "beta": jnp.zeros((1, E), jnp.float32),
    }


def attention_layer_ref(x, params, num_heads: int):
    """Pure-JAX reference (mirrors PyTorch MultiheadAttention semantics)."""
    B, S, E = x.shape
    H, D = num_heads, E // num_heads
    q = x @ params["wqT"] + params["bq"]
    k = x @ params["wkT"] + params["bk"]
    v = x @ params["wvT"] + params["bv"]

    def split(t):  # (B, S, E) -> (B, H, S, D)
        return t.reshape(B, S, H, D).transpose(0, 2, 1, 3)

    qh, kh, vh = split(q), split(k), split(v)
    s = jnp.einsum("bhqd,bhkd->bhqk", qh, kh) / math.sqrt(D)
    p = jax.nn.softmax(s, axis=-1)
    o = jnp.einsum("bhqk,bhkd->bhqd", p, vh).transpose(0, 2, 1, 3).reshape(B, S, E)
    attn_out = o @ params["woT"] + params["bo"]
    y = x + attn_out
    mean = jnp.mean(y, axis=-1, keepdims=True)
    var = jnp.mean((y - mean) ** 2, axis=-1, keepdims=True)
    y = (y - mean) / jnp.sqrt(var + 1e-5) * params["gamma"] + params["beta"]
    return y, jnp.mean(p, axis=1)


if __name__ == "__main__":
    B, S, E, H = 2, 8, 32, 4
    key = jax.random.PRNGKey(0)
    kx, kp = jax.random.split(key)
    x = jax.random.normal(kx, (B, S, E), jnp.float32)
    params = make_params(E, kp)

    y_ref, aw_ref = attention_layer_ref(x, params, num_heads=H)

    # f32 MXU operands: near-exact check (approx reciprocal only difference).
    y32, aw32 = attention_layer_pallas(x, params, num_heads=H,
                                       compute_dtype=jnp.float32)
    y32 = jax.block_until_ready(y32)
    aw32 = jax.block_until_ready(aw32)
    assert jnp.allclose(y32, y_ref, atol=2e-3, rtol=2e-3), "f32 output mismatch"
    assert jnp.allclose(aw32, aw_ref, atol=2e-3, rtol=2e-3), "f32 attn-weight mismatch"

    # bf16 MXU operands (perf mode), f32 accumulation: relaxed check.
    ybf, awbf = attention_layer_pallas(x, params, num_heads=H,
                                       compute_dtype=jnp.bfloat16)
    ybf = jax.block_until_ready(ybf)
    awbf = jax.block_until_ready(awbf)
    assert jnp.allclose(ybf, y_ref, atol=3e-2, rtol=3e-2), "bf16 output mismatch"
    assert jnp.allclose(awbf, aw_ref, atol=3e-2, rtol=3e-2), "bf16 attn-weight mismatch"

    print("KERNEL_OK")
</pallas_src>

<mosaic_0001>
module attributes {stable_mosaic.version = 11 : i64} {
  func.func @_attention_layer_kernel(%arg0: i32, %arg1: memref<1x8x32xf32, #tpu.memory_space<vmem>>, %arg2: memref<4x32x24xf32, #tpu.memory_space<vmem>>, %arg3: memref<4x1x24xf32, #tpu.memory_space<vmem>>, %arg4: memref<4x8x32xf32, #tpu.memory_space<vmem>>, %arg5: memref<1x32xf32, #tpu.memory_space<vmem>>, %arg6: memref<1x32xf32, #tpu.memory_space<vmem>>, %arg7: memref<1x32xf32, #tpu.memory_space<vmem>>, %arg8: memref<1x8x32xf32, #tpu.memory_space<vmem>>, %arg9: memref<1x8x8xf32, #tpu.memory_space<vmem>>) attributes {dimension_semantics = [#tpu.dimension_semantics<parallel>], iteration_bounds = array<i64: 2>, scalar_prefetch = 0 : i64, scratch_operands = 0 : i64, tpu.core_type = #tpu.core_type<tc>, window_params = [{transform_indices = @transform_0, window_bounds = array<i64: 1, 8, 32>}, {pipeline_mode = #tpu.pipeline_mode<synchronous>, transform_indices = @transform_1, window_bounds = array<i64: 4, 32, 24>}, {pipeline_mode = #tpu.pipeline_mode<synchronous>, transform_indices = @transform_2, window_bounds = array<i64: 4, 1, 24>}, {pipeline_mode = #tpu.pipeline_mode<synchronous>, transform_indices = @transform_3, window_bounds = array<i64: 4, 8, 32>}, {pipeline_mode = #tpu.pipeline_mode<synchronous>, transform_indices = @transform_4, window_bounds = array<i64: 1, 32>}, {pipeline_mode = #tpu.pipeline_mode<synchronous>, transform_indices = @transform_5, window_bounds = array<i64: 1, 32>}, {pipeline_mode = #tpu.pipeline_mode<synchronous>, transform_indices = @transform_6, window_bounds = array<i64: 1, 32>}, {transform_indices = @transform_7, window_bounds = array<i64: 1, 8, 32>}, {transform_indices = @transform_8, window_bounds = array<i64: 1, 8, 8>}]} {
    %c0 = arith.constant 0 : index
    %c0_0 = arith.constant 0 : index
    %c0_1 = arith.constant 0 : index
    %0 = vector.load %arg1[%c0, %c0_0, %c0_1] : memref<1x8x32xf32, #tpu.memory_space<vmem>>, vector<1x8x32xf32>
    %1 = vector.shape_cast %0 : vector<1x8x32xf32> to vector<8x32xf32>
    %cst = arith.constant 0.000000e+00 : f32
    %2 = vector.broadcast %cst : f32 to vector<8x32xf32>
    %cst_2 = arith.constant 0.000000e+00 : f32
    %3 = vector.broadcast %cst_2 : f32 to vector<8x8xf32>
    %c0_3 = arith.constant 0 : index
    %c0_4 = arith.constant 0 : index
    %c0_5 = arith.constant 0 : index
    %4 = vector.load %arg2[%c0_3, %c0_4, %c0_5] : memref<4x32x24xf32, #tpu.memory_space<vmem>>, vector<1x32x24xf32>
    %5 = vector.shape_cast %4 : vector<1x32x24xf32> to vector<32x24xf32>
    %cst_6 = arith.constant dense<0.000000e+00> : vector<8x24xf32>
    %6 = tpu.matmul %1, %5, %cst_6 {dimension_numbers = #tpu.dot_dimension_numbers<[1], [0], [0], [1], [0, 0, 1, 1], [], []>} : vector<8x32xf32>, vector<32x24xf32>, vector<8x24xf32> -> vector<8x24xf32>
    %c0_7 = arith.constant 0 : index
    %c0_8 = arith.constant 0 : index
    %c0_9 = arith.constant 0 : index
    %7 = vector.load %arg3[%c0_7, %c0_8, %c0_9] : memref<4x1x24xf32, #tpu.memory_space<vmem>>, vector<1x1x24xf32>
    %8 = vector.shape_cast %7 : vector<1x1x24xf32> to vector<1x24xf32>
    %9 = vector.broadcast %8 : vector<1x24xf32> to vector<8x24xf32>
    %10 = arith.addf %6, %9 : vector<8x24xf32>
    %11 = vector.extract_strided_slice %10 {offsets = [0, 0], sizes = [8, 8], strides = [1, 1]} : vector<8x24xf32> to vector<8x8xf32>
    %cst_10 = arith.constant 0.353553385 : f32
    %12 = vector.broadcast %cst_10 : f32 to vector<8x8xf32>
    %13 = arith.mulf %11, %12 : vector<8x8xf32>
    %14 = vector.extract_strided_slice %10 {offsets = [0, 8], sizes = [8, 8], strides = [1, 1]} : vector<8x24xf32> to vector<8x8xf32>
    %15 = vector.extract_strided_slice %10 {offsets = [0, 16], sizes = [8, 8], strides = [1, 1]} : vector<8x24xf32> to vector<8x8xf32>
    %cst_11 = arith.constant dense<0.000000e+00> : vector<8x8xf32>
    %16 = tpu.matmul %13, %14, %cst_11 {dimension_numbers = #tpu.dot_dimension_numbers<[1], [1], [0], [0], [0, 0, 1, 0], [], []>} : vector<8x8xf32>, vector<8x8xf32>, vector<8x8xf32> -> vector<8x8xf32>
    %cst_12 = arith.constant dense<0xFF800000> : vector<8xf32>
    %17 = vector.multi_reduction <maximumf>, %16, %cst_12 [1] : vector<8x8xf32> to vector<8xf32>
    %18 = vector.shape_cast %17 : vector<8xf32> to vector<8x1xf32>
    %19 = vector.broadcast %18 : vector<8x1xf32> to vector<8x8xf32>
    %20 = arith.subf %16, %19 : vector<8x8xf32>
    %21 = math.exp %20 : vector<8x8xf32>
    %cst_13 = arith.constant dense<0.000000e+00> : vector<8xf32>
    %22 = vector.multi_reduction <add>, %21, %cst_13 [1] : vector<8x8xf32> to vector<8xf32>
    %23 = vector.shape_cast %22 : vector<8xf32> to vector<8x1xf32>
    %24 = tpu.reciprocal %23 {approx = true} : vector<8x1xf32> -> vector<8x1xf32>
    %25 = vector.broadcast %24 : vector<8x1xf32> to vector<8x8xf32>
    %26 = arith.mulf %21, %25 : vector<8x8xf32>
    %cst_14 = arith.constant dense<0.000000e+00> : vector<8x8xf32>
    %27 = tpu.matmul %26, %15, %cst_14 {dimension_numbers = #tpu.dot_dimension_numbers<[1], [0], [0], [1], [0, 0, 1, 1], [], []>} : vector<8x8xf32>, vector<8x8xf32>, vector<8x8xf32> -> vector<8x8xf32>
    %c0_15 = arith.constant 0 : index
    %c0_16 = arith.constant 0 : index
    %c0_17 = arith.constant 0 : index
    %28 = vector.load %arg4[%c0_15, %c0_16, %c0_17] : memref<4x8x32xf32, #tpu.memory_space<vmem>>, vector<1x8x32xf32>
    %29 = vector.shape_cast %28 : vector<1x8x32xf32> to vector<8x32xf32>
    %cst_18 = arith.constant dense<0.000000e+00> : vector<8x32xf32>
    %30 = tpu.matmul %27, %29, %cst_18 {dimension_numbers = #tpu.dot_dimension_numbers<[1], [0], [0], [1], [0, 0, 1, 1], [], []>} : vector<8x8xf32>, vector<8x32xf32>, vector<8x32xf32> -> vector<8x32xf32>
    %31 = arith.addf %2, %30 : vector<8x32xf32>
    %32 = arith.addf %3, %26 : vector<8x8xf32>
    %c1 = arith.constant 1 : index
    %c0_19 = arith.constant 0 : index
    %c0_20 = arith.constant 0 : index
    %33 = vector.load %arg2[%c1, %c0_19, %c0_20] : memref<4x32x24xf32, #tpu.memory_space<vmem>>, vector<1x32x24xf32>
    %34 = vector.shape_cast %33 : vector<1x32x24xf32> to vector<32x24xf32>
    %cst_21 = arith.constant dense<0.000000e+00> : vector<8x24xf32>
    %35 = tpu.matmul %1, %34, %cst_21 {dimension_numbers = #tpu.dot_dimension_numbers<[1], [0], [0], [1], [0, 0, 1, 1], [], []>} : vector<8x32xf32>, vector<32x24xf32>, vector<8x24xf32> -> vector<8x24xf32>
    %c1_22 = arith.constant 1 : index
    %c0_23 = arith.constant 0 : index
    %c0_24 = arith.constant 0 : index
    %36 = vector.load %arg3[%c1_22, %c0_23, %c0_24] : memref<4x1x24xf32, #tpu.memory_space<vmem>>, vector<1x1x24xf32>
    %37 = vector.shape_cast %36 : vector<1x1x24xf32> to vector<1x24xf32>
    %38 = vector.broadcast %37 : vector<1x24xf32> to vector<8x24xf32>
    %39 = arith.addf %35, %38 : vector<8x24xf32>
    %40 = vector.extract_strided_slice %39 {offsets = [0, 0], sizes = [8, 8], strides = [1, 1]} : vector<8x24xf32> to vector<8x8xf32>
    %cst_25 = arith.constant 0.353553385 : f32
    %41 = vector.broadcast %cst_25 : f32 to vector<8x8xf32>
    %42 = arith.mulf %40, %41 : vector<8x8xf32>
    %43 = vector.extract_strided_slice %39 {offsets = [0, 8], sizes = [8, 8], strides = [1, 1]} : vector<8x24xf32> to vector<8x8xf32>
    %44 = vector.extract_strided_slice %39 {offsets = [0, 16], sizes = [8, 8], strides = [1, 1]} : vector<8x24xf32> to vector<8x8xf32>
    %cst_26 = arith.constant dense<0.000000e+00> : vector<8x8xf32>
    %45 = tpu.matmul %42, %43, %cst_26 {dimension_numbers = #tpu.dot_dimension_numbers<[1], [1], [0], [0], [0, 0, 1, 0], [], []>} : vector<8x8xf32>, vector<8x8xf32>, vector<8x8xf32> -> vector<8x8xf32>
    %cst_27 = arith.constant dense<0xFF800000> : vector<8xf32>
    %46 = vector.multi_reduction <maximumf>, %45, %cst_27 [1] : vector<8x8xf32> to vector<8xf32>
    %47 = vector.shape_cast %46 : vector<8xf32> to vector<8x1xf32>
    %48 = vector.broadcast %47 : vector<8x1xf32> to vector<8x8xf32>
    %49 = arith.subf %45, %48 : vector<8x8xf32>
    %50 = math.exp %49 : vector<8x8xf32>
    %cst_28 = arith.constant dense<0.000000e+00> : vector<8xf32>
    %51 = vector.multi_reduction <add>, %50, %cst_28 [1] : vector<8x8xf32> to vector<8xf32>
    %52 = vector.shape_cast %51 : vector<8xf32> to vector<8x1xf32>
    %53 = tpu.reciprocal %52 {approx = true} : vector<8x1xf32> -> vector<8x1xf32>
    %54 = vector.broadcast %53 : vector<8x1xf32> to vector<8x8xf32>
    %55 = arith.mulf %50, %54 : vector<8x8xf32>
    %cst_29 = arith.constant dense<0.000000e+00> : vector<8x8xf32>
    %56 = tpu.matmul %55, %44, %cst_29 {dimension_numbers = #tpu.dot_dimension_numbers<[1], [0], [0], [1], [0, 0, 1, 1], [], []>} : vector<8x8xf32>, vector<8x8xf32>, vector<8x8xf32> -> vector<8x8xf32>
    %c1_30 = arith.constant 1 : index
    %c0_31 = arith.constant 0 : index
    %c0_32 = arith.constant 0 : index
    %57 = vector.load %arg4[%c1_30, %c0_31, %c0_32] : memref<4x8x32xf32, #tpu.memory_space<vmem>>, vector<1x8x32xf32>
    %58 = vector.shape_cast %57 : vector<1x8x32xf32> to vector<8x32xf32>
    %cst_33 = arith.constant dense<0.000000e+00> : vector<8x32xf32>
    %59 = tpu.matmul %56, %58, %cst_33 {dimension_numbers = #tpu.dot_dimension_numbers<[1], [0], [0], [1], [0, 0, 1, 1], [], []>} : vector<8x8xf32>, vector<8x32xf32>, vector<8x32xf32> -> vector<8x32xf32>
    %60 = arith.addf %31, %59 : vector<8x32xf32>
    %61 = arith.addf %32, %55 : vector<8x8xf32>
    %c2 = arith.constant 2 : index
    %c0_34 = arith.constant 0 : index
    %c0_35 = arith.constant 0 : index
    %62 = vector.load %arg2[%c2, %c0_34, %c0_35] : memref<4x32x24xf32, #tpu.memory_space<vmem>>, vector<1x32x24xf32>
    %63 = vector.shape_cast %62 : vector<1x32x24xf32> to vector<32x24xf32>
    %cst_36 = arith.constant dense<0.000000e+00> : vector<8x24xf32>
    %64 = tpu.matmul %1, %63, %cst_36 {dimension_numbers = #tpu.dot_dimension_numbers<[1], [0], [0], [1], [0, 0, 1, 1], [], []>} : vector<8x32xf32>, vector<32x24xf32>, vector<8x24xf32> -> vector<8x24xf32>
    %c2_37 = arith.constant 2 : index
    %c0_38 = arith.constant 0 : index
    %c0_39 = arith.constant 0 : index
    %65 = vector.load %arg3[%c2_37, %c0_38, %c0_39] : memref<4x1x24xf32, #tpu.memory_space<vmem>>, vector<1x1x24xf32>
    %66 = vector.shape_cast %65 : vector<1x1x24xf32> to vector<1x24xf32>
    %67 = vector.broadcast %66 : vector<1x24xf32> to vector<8x24xf32>
    %68 = arith.addf %64, %67 : vector<8x24xf32>
    %69 = vector.extract_strided_slice %68 {offsets = [0, 0], sizes = [8, 8], strides = [1, 1]} : vector<8x24xf32> to vector<8x8xf32>
    %cst_40 = arith.constant 0.353553385 : f32
    %70 = vector.broadcast %cst_40 : f32 to vector<8x8xf32>
    %71 = arith.mulf %69, %70 : vector<8x8xf32>
    %72 = vector.extract_strided_slice %68 {offsets = [0, 8], sizes = [8, 8], strides = [1, 1]} : vector<8x24xf32> to vector<8x8xf32>
    %73 = vector.extract_strided_slice %68 {offsets = [0, 16], sizes = [8, 8], strides = [1, 1]} : vector<8x24xf32> to vector<8x8xf32>
    %cst_41 = arith.constant dense<0.000000e+00> : vector<8x8xf32>
    %74 = tpu.matmul %71, %72, %cst_41 {dimension_numbers = #tpu.dot_dimension_numbers<[1], [1], [0], [0], [0, 0, 1, 0], [], []>} : vector<8x8xf32>, vector<8x8xf32>, vector<8x8xf32> -> vector<8x8xf32>
    %cst_42 = arith.constant dense<0xFF800000> : vector<8xf32>
    %75 = vector.multi_reduction <maximumf>, %74, %cst_42 [1] : vector<8x8xf32> to vector<8xf32>
    %76 = vector.shape_cast %75 : vector<8xf32> to vector<8x1xf32>
    %77 = vector.broadcast %76 : vector<8x1xf32> to vector<8x8xf32>
    %78 = arith.subf %74, %77 : vector<8x8xf32>
    %79 = math.exp %78 : vector<8x8xf32>
    %cst_43 = arith.constant dense<0.000000e+00> : vector<8xf32>
    %80 = vector.multi_reduction <add>, %79, %cst_43 [1] : vector<8x8xf32> to vector<8xf32>
    %81 = vector.shape_cast %80 : vector<8xf32> to vector<8x1xf32>
    %82 = tpu.reciprocal %81 {approx = true} : vector<8x1xf32> -> vector<8x1xf32>
    %83 = vector.broadcast %82 : vector<8x1xf32> to vector<8x8xf32>
    %84 = arith.mulf %79, %83 : vector<8x8xf32>
    %cst_44 = arith.constant dense<0.000000e+00> : vector<8x8xf32>
    %85 = tpu.matmul %84, %73, %cst_44 {dimension_numbers = #tpu.dot_dimension_numbers<[1], [0], [0], [1], [0, 0, 1, 1], [], []>} : vector<8x8xf32>, vector<8x8xf32>, vector<8x8xf32> -> vector<8x8xf32>
    %c2_45 = arith.constant 2 : index
    %c0_46 = arith.constant 0 : index
    %c0_47 = arith.constant 0 : index
    %86 = vector.load %arg4[%c2_45, %c0_46, %c0_47] : memref<4x8x32xf32, #tpu.memory_space<vmem>>, vector<1x8x32xf32>
    %87 = vector.shape_cast %86 : vector<1x8x32xf32> to vector<8x32xf32>
    %cst_48 = arith.constant dense<0.000000e+00> : vector<8x32xf32>
    %88 = tpu.matmul %85, %87, %cst_48 {dimension_numbers = #tpu.dot_dimension_numbers<[1], [0], [0], [1], [0, 0, 1, 1], [], []>} : vector<8x8xf32>, vector<8x32xf32>, vector<8x32xf32> -> vector<8x32xf32>
    %89 = arith.addf %60, %88 : vector<8x32xf32>
    %90 = arith.addf %61, %84 : vector<8x8xf32>
    %c3 = arith.constant 3 : index
    %c0_49 = arith.constant 0 : index
    %c0_50 = arith.constant 0 : index
    %91 = vector.load %arg2[%c3, %c0_49, %c0_50] : memref<4x32x24xf32, #tpu.memory_space<vmem>>, vector<1x32x24xf32>
    %92 = vector.shape_cast %91 : vector<1x32x24xf32> to vector<32x24xf32>
    %cst_51 = arith.constant dense<0.000000e+00> : vector<8x24xf32>
    %93 = tpu.matmul %1, %92, %cst_51 {dimension_numbers = #tpu.dot_dimension_numbers<[1], [0], [0], [1], [0, 0, 1, 1], [], []>} : vector<8x32xf32>, vector<32x24xf32>, vector<8x24xf32> -> vector<8x24xf32>
    %c3_52 = arith.constant 3 : index
    %c0_53 = arith.constant 0 : index
    %c0_54 = arith.constant 0 : index
    %94 = vector.load %arg3[%c3_52, %c0_53, %c0_54] : memref<4x1x24xf32, #tpu.memory_space<vmem>>, vector<1x1x24xf32>
    %95 = vector.shape_cast %94 : vector<1x1x24xf32> to vector<1x24xf32>
    %96 = vector.broadcast %95 : vector<1x24xf32> to vector<8x24xf32>
    %97 = arith.addf %93, %96 : vector<8x24xf32>
    %98 = vector.extract_strided_slice %97 {offsets = [0, 0], sizes = [8, 8], strides = [1, 1]} : vector<8x24xf32> to vector<8x8xf32>
    %cst_55 = arith.constant 0.353553385 : f32
    %99 = vector.broadcast %cst_55 : f32 to vector<8x8xf32>
    %100 = arith.mulf %98, %99 : vector<8x8xf32>
    %101 = vector.extract_strided_slice %97 {offsets = [0, 8], sizes = [8, 8], strides = [1, 1]} : vector<8x24xf32> to vector<8x8xf32>
    %102 = vector.extract_strided_slice %97 {offsets = [0, 16], sizes = [8, 8], strides = [1, 1]} : vector<8x24xf32> to vector<8x8xf32>
    %cst_56 = arith.constant dense<0.000000e+00> : vector<8x8xf32>
    %103 = tpu.matmul %100, %101, %cst_56 {dimension_numbers = #tpu.dot_dimension_numbers<[1], [1], [0], [0], [0, 0, 1, 0], [], []>} : vector<8x8xf32>, vector<8x8xf32>, vector<8x8xf32> -> vector<8x8xf32>
    %cst_57 = arith.constant dense<0xFF800000> : vector<8xf32>
    %104 = vector.multi_reduction <maximumf>, %103, %cst_57 [1] : vector<8x8xf32> to vector<8xf32>
    %105 = vector.shape_cast %104 : vector<8xf32> to vector<8x1xf32>
    %106 = vector.broadcast %105 : vector<8x1xf32> to vector<8x8xf32>
    %107 = arith.subf %103, %106 : vector<8x8xf32>
    %108 = math.exp %107 : vector<8x8xf32>
    %cst_58 = arith.constant dense<0.000000e+00> : vector<8xf32>
    %109 = vector.multi_reduction <add>, %108, %cst_58 [1] : vector<8x8xf32> to vector<8xf32>
    %110 = vector.shape_cast %109 : vector<8xf32> to vector<8x1xf32>
    %111 = tpu.reciprocal %110 {approx = true} : vector<8x1xf32> -> vector<8x1xf32>
    %112 = vector.broadcast %111 : vector<8x1xf32> to vector<8x8xf32>
    %113 = arith.mulf %108, %112 : vector<8x8xf32>
    %cst_59 = arith.constant dense<0.000000e+00> : vector<8x8xf32>
    %114 = tpu.matmul %113, %102, %cst_59 {dimension_numbers = #tpu.dot_dimension_numbers<[1], [0], [0], [1], [0, 0, 1, 1], [], []>} : vector<8x8xf32>, vector<8x8xf32>, vector<8x8xf32> -> vector<8x8xf32>
    %c3_60 = arith.constant 3 : index
    %c0_61 = arith.constant 0 : index
    %c0_62 = arith.constant 0 : index
    %115 = vector.load %arg4[%c3_60, %c0_61, %c0_62] : memref<4x8x32xf32, #tpu.memory_space<vmem>>, vector<1x8x32xf32>
    %116 = vector.shape_cast %115 : vector<1x8x32xf32> to vector<8x32xf32>
    %cst_63 = arith.constant dense<0.000000e+00> : vector<8x32xf32>
    %117 = tpu.matmul %114, %116, %cst_63 {dimension_numbers = #tpu.dot_dimension_numbers<[1], [0], [0], [1], [0, 0, 1, 1], [], []>} : vector<8x8xf32>, vector<8x32xf32>, vector<8x32xf32> -> vector<8x32xf32>
    %118 = arith.addf %89, %117 : vector<8x32xf32>
    %119 = arith.addf %90, %113 : vector<8x8xf32>
    %120 = arith.addf %1, %118 : vector<8x32xf32>
    %c0_64 = arith.constant 0 : index
    %c0_65 = arith.constant 0 : index
    %121 = vector.load %arg5[%c0_64, %c0_65] : memref<1x32xf32, #tpu.memory_space<vmem>>, vector<1x32xf32>
    %122 = vector.broadcast %121 : vector<1x32xf32> to vector<8x32xf32>
    %123 = arith.addf %120, %122 : vector<8x32xf32>
    %cst_66 = arith.constant dense<0.000000e+00> : vector<8xf32>
    %124 = vector.multi_reduction <add>, %123, %cst_66 [1] : vector<8x32xf32> to vector<8xf32>
    %125 = vector.shape_cast %124 : vector<8xf32> to vector<8x1xf32>
    %cst_67 = arith.constant 3.200000e+01 : f32
    %126 = vector.broadcast %cst_67 : f32 to vector<8x1xf32>
    %127 = arith.divf %125, %126 : vector<8x1xf32>
    %128 = vector.broadcast %127 : vector<8x1xf32> to vector<8x32xf32>
    %129 = arith.subf %123, %128 : vector<8x32xf32>
    %130 = arith.mulf %129, %129 : vector<8x32xf32>
    %cst_68 = arith.constant dense<0.000000e+00> : vector<8xf32>
    %131 = vector.multi_reduction <add>, %130, %cst_68 [1] : vector<8x32xf32> to vector<8xf32>
    %132 = vector.shape_cast %131 : vector<8xf32> to vector<8x1xf32>
    %cst_69 = arith.constant 3.200000e+01 : f32
    %133 = vector.broadcast %cst_69 : f32 to vector<8x1xf32>
    %134 = arith.divf %132, %133 : vector<8x1xf32>
    %135 = vector.broadcast %127 : vector<8x1xf32> to vector<8x32xf32>
    %136 = arith.subf %123, %135 : vector<8x32xf32>
    %cst_70 = arith.constant 9.99999974E-6 : f32
    %137 = vector.broadcast %cst_70 : f32 to vector<8x1xf32>
    %138 = arith.addf %134, %137 : vector<8x1xf32>
    %139 = math.rsqrt %138 : vector<8x1xf32>
    %140 = vector.broadcast %139 : vector<8x1xf32> to vector<8x32xf32>
    %141 = arith.mulf %136, %140 : vector<8x32xf32>
    %c0_71 = arith.constant 0 : index
    %c0_72 = arith.constant 0 : index
    %142 = vector.load %arg6[%c0_71, %c0_72] : memref<1x32xf32, #tpu.memory_space<vmem>>, vector<1x32xf32>
    %143 = vector.broadcast %142 : vector<1x32xf32> to vector<8x32xf32>
    %144 = arith.mulf %141, %143 : vector<8x32xf32>
    %c0_73 = arith.constant 0 : index
    %c0_74 = arith.constant 0 : index
    %145 = vector.load %arg7[%c0_73, %c0_74] : memref<1x32xf32, #tpu.memory_space<vmem>>, vector<1x32xf32>
    %146 = vector.broadcast %145 : vector<1x32xf32> to vector<8x32xf32>
    %147 = arith.addf %144, %146 : vector<8x32xf32>
    %c0_75 = arith.constant 0 : index
    %c0_76 = arith.constant 0 : index
    %c0_77 = arith.constant 0 : index
    %148 = vector.load %arg8[%c0_75, %c0_76, %c0_77] : memref<1x8x32xf32, #tpu.memory_space<vmem>>, vector<1x8x32xf32>
    %149 = vector.shape_cast %148 : vector<1x8x32xf32> to vector<8x32xf32>
    %150 = vector.shape_cast %147 : vector<8x32xf32> to vector<1x8x32xf32>
    tpu.vector_store %arg8[%c0_75, %c0_76, %c0_77], %150 {strides = array<i32>} : memref<1x8x32xf32, #tpu.memory_space<vmem>>, vector<1x8x32xf32>,
    %cst_78 = arith.constant 2.500000e-01 : f32
    %151 = vector.broadcast %cst_78 : f32 to vector<8x8xf32>
    %152 = arith.mulf %119, %151 : vector<8x8xf32>
    %c0_79 = arith.constant 0 : index
    %c0_80 = arith.constant 0 : index
    %c0_81 = arith.constant 0 : index
    %153 = vector.load %arg9[%c0_79, %c0_80, %c0_81] : memref<1x8x8xf32, #tpu.memory_space<vmem>>, vector<1x8x8xf32>
    %154 = vector.shape_cast %153 : vector<1x8x8xf32> to vector<8x8xf32>
    %155 = vector.shape_cast %152 : vector<8x8xf32> to vector<1x8x8xf32>
    tpu.vector_store %arg9[%c0_79, %c0_80, %c0_81], %155 {strides = array<i32>} : memref<1x8x8xf32, #tpu.memory_space<vmem>>, vector<1x8x8xf32>,
    return
  }
  func.func @transform_0(%arg0: i32) -> (i32, i32, i32) {
    %c0_i32 = arith.constant 0 : i32
    %c0_i32_0 = arith.constant 0 : i32
    %c0_i32_1 = arith.constant 0 : i32
    return %arg0, %c0_i32, %c0_i32_0 : i32, i32, i32
  }
  func.func @transform_1(%arg0: i32) -> (i32, i32, i32) {
    %c0_i32 = arith.constant 0 : i32
    %c0_i32_0 = arith.constant 0 : i32
    %c0_i32_1 = arith.constant 0 : i32
    %c0_i32_2 = arith.constant 0 : i32
    return %c0_i32, %c0_i32_0, %c0_i32_1 : i32, i32, i32
  }
  func.func @transform_2(%arg0: i32) -> (i32, i32, i32) {
    %c0_i32 = arith.constant 0 : i32
    %c0_i32_0 = arith.constant 0 : i32
    %c0_i32_1 = arith.constant 0 : i32
    %c0_i32_2 = arith.constant 0 : i32
    return %c0_i32, %c0_i32_0, %c0_i32_1 : i32, i32, i32
  }
  func.func @transform_3(%arg0: i32) -> (i32, i32, i32) {
    %c0_i32 = arith.constant 0 : i32
    %c0_i32_0 = arith.constant 0 : i32
    %c0_i32_1 = arith.constant 0 : i32
    %c0_i32_2 = arith.constant 0 : i32
    return %c0_i32, %c0_i32_0, %c0_i32_1 : i32, i32, i32
  }
  func.func @transform_4(%arg0: i32) -> (i32, i32) {
    %c0_i32 = arith.constant 0 : i32
    %c0_i32_0 = arith.constant 0 : i32
    %c0_i32_1 = arith.constant 0 : i32
    return %c0_i32, %c0_i32_0 : i32, i32
  }
  func.func @transform_5(%arg0: i32) -> (i32, i32) {
    %c0_i32 = arith.constant 0 : i32
    %c0_i32_0 = arith.constant 0 : i32
    %c0_i32_1 = arith.constant 0 : i32
    return %c0_i32, %c0_i32_0 : i32, i32
  }
  func.func @transform_6(%arg0: i32) -> (i32, i32) {
    %c0_i32 = arith.constant 0 : i32
    %c0_i32_0 = arith.constant 0 : i32
    %c0_i32_1 = arith.constant 0 : i32
    return %c0_i32, %c0_i32_0 : i32, i32
  }
  func.func @transform_7(%arg0: i32) -> (i32, i32, i32) {
    %c0_i32 = arith.constant 0 : i32
    %c0_i32_0 = arith.constant 0 : i32
    %c0_i32_1 = arith.constant 0 : i32
    return %arg0, %c0_i32, %c0_i32_0 : i32, i32, i32
  }
  func.func @transform_8(%arg0: i32) -> (i32, i32, i32) {
    %c0_i32 = arith.constant 0 : i32
    %c0_i32_0 = arith.constant 0 : i32
    %c0_i32_1 = arith.constant 0 : i32
    return %arg0, %c0_i32, %c0_i32_0 : i32, i32, i32
  }
}

</mosaic_0001>

<llo_original>
// kernel: tpu_custom_call.1
$region0: #{tpu_custom_call.1}
  #allocation0 [shape = 'u32[]', space=smem, size = 0x4, offset = 0x4, fixed_abs, tag = 'smem constant byte address 0x4 - core index']
  #allocation1 [shape = 'u32[144,128]{1,0:T(1,128)}', space=vmem, size = 0x12000, scoped, tag = 'internal scratch']
  %s0 = inlined_call_operand.vmem [shape: f32[2,8,32], index: 0, kind: input, shape index: {}]
  %s1 = inlined_call_operand.vmem [shape: f32[4,32,24], index: 1, kind: input, shape index: {}]
  %s2 = inlined_call_operand.vmem [shape: f32[4,1,24], index: 2, kind: input, shape index: {}]
  %s3 = inlined_call_operand.vmem [shape: f32[4,8,32], index: 3, kind: input, shape index: {}]
  %s4 = inlined_call_operand.vmem [shape: f32[1,32], index: 4, kind: input, shape index: {}]
  %s5 = inlined_call_operand.vmem [shape: f32[1,32], index: 5, kind: input, shape index: {}]
  %s6 = inlined_call_operand.vmem [shape: f32[1,32], index: 6, kind: input, shape index: {}]
  %s7 = inlined_call_operand.hbm [shape: f32[2,8,32], index: 7, kind: output, shape index: {0}]
  %s8 = inlined_call_operand.hbm [shape: f32[2,8,8], index: 8, kind: output, shape index: {1}]
  %9 = xla_tuple %s7, %s8
  %s10 = sld [smem:[#allocation0]]
  $region69: #{tpu_custom_call.1} parent=0
    _
  %s12 = ssub.s32 1, %s10
  %s13 = scalar_select 0, %s12, %s10
  $region1: #{tpu_custom_call.1} parent=0
    #allocation2 [shape = 'u8[8192]{0}', space=vmem, size = 0x2000, scoped, tag = 'output window, operand 0']
    #allocation3 [shape = 's32[2]{0}', space=sflag, size = 0x8, scoped, tag = 'scoped memory for tpu_custom_call.1']
    #allocation4 [shape = 'u8[8192]{0}', space=vmem, size = 0x2000, scoped, tag = 'output window, operand 1']
    #allocation5 [shape = 's32[2]{0}', space=sflag, size = 0x8, scoped, tag = 'scoped memory for tpu_custom_call.1']
    %14 = vsyncpa [#allocation3], 0
    %s15 = scalar_lea.sflag [#allocation3], 1
    %16 = vsyncpa %s15, 0
    %17 = vsyncpa [#allocation5], 0
    %s18 = scalar_lea.sflag [#allocation5], 1
    %19 = vsyncpa %s18, 0
    loop: start=0, step=1, limit=4
    $region2: #{tpu_custom_call.1} parent=1 // loop_pre_header
      _
    $region3: #{tpu_custom_call.1} parent=1 // loop_header
      %s21 = sphi 0, %s25
      %p22 = scmp.ge.s32.totalorder %s21, 4
      %s31 = sphi 0, %s33
      %s34 = sphi 0, %s31
      %s35 = sphi 0, %s34
      %s51 = sphi 0, %s35
      %s55 = sphi 0, %s55
      %s57 = sphi 0, %s55
      %s58 = sphi 0, %s57
      %s72 = sphi 0, %s58
      %s76 = sphi 0, %s76
      %s78 = sphi 0, %s76
      %s79 = sphi 0, %s78
      %s93 = sphi 0, %s79
      %s97 = sphi 0, %s97
      %s99 = sphi 0, %s97
      %s100 = sphi 0, %s99
      %s114 = sphi 0, %s100
      %s118 = sphi 0, %s118
      %s120 = sphi 0, %s118
      %s121 = sphi 0, %s120
      %s135 = sphi 0, %s121
      %s139 = sphi 0, %s139
      %s141 = sphi 0, %s139
      %s142 = sphi 0, %s141
      %s156 = sphi 0, %s142
      %s160 = sphi 0, %s160
      %s162 = sphi 0, %s160
      %s163 = sphi 0, %s162
      %s177 = sphi 0, %s163
      %s183 = sphi 0, %s185
      %s186 = sphi 0, %s183
      %s187 = sphi 0, %s186
      %s203 = sphi 0, %s187
      %s209 = sphi 0, %s211
      %s212 = sphi 0, %s209
      %s213 = sphi 0, %s212
      %s229 = sphi 0, %s213
    $region4: #{tpu_custom_call.1} parent=1 // loop_header_branch
      %24 = sbr.rel (%p22) target = $region8
    $region5: #{tpu_custom_call.1} parent=1 // loop_body
      %s26 = ssub.s32 %s21, 1
      %s27 = ssub.s32 %s21, 2
      %s28 = sadd.s32 %s21, 1
      %s29 = ssub.s32 %s21, %s28
      %p30 = scmp.eq.s32.totalorder %s29, 0
      %s32 = sadd.s32 %s31, 1
      %s33 = scalar_select %p30, %s31, %s32
      %p36 = pneg %p30
      %p37 = scmp.eq.s32.totalorder %s21, 1
      %p38 = por %p36, %p37
      %p39 = scmp.ne.s32.totalorder %s31, %s34
      %p40 = scmp.eq.s32.totalorder %s21, 0
      %p41 = por %p39, %p40
      %p42 = scmp.ne.s32.totalorder %s31, %s34
      %p43 = scmp.eq.s32.totalorder %s26, 1
      %p44 = por %p42, %p43
      %p45 = scmp.ne.s32.totalorder %s34, %s35
      %p46 = scmp.eq.s32.totalorder %s26, 0
      %p47 = por %p45, %p46
      %p48 = scmp.ne.s32.totalorder %s34, %s35
      %p49 = scmp.eq.s32.totalorder %s27, 1
      %p50 = por %p48, %p49
      %p52 = scmp.ne.s32.totalorder %s35, %s51
      %p53 = scmp.eq.s32.totalorder %s27, 0
      %p54 = por %p52, %p53
      %s56 = sadd.s32 %s55, 1
      %p59 = scmp.eq.s32.totalorder %s21, 1
      %p60 = scmp.ne.s32.totalorder %s55, %s57
      %p61 = scmp.eq.s32.totalorder %s21, 0
      %p62 = por %p60, %p61
      %p63 = scmp.ne.s32.totalorder %s55, %s57
      %p64 = scmp.eq.s32.totalorder %s26, 1
      %p65 = por %p63, %p64
      %p66 = scmp.ne.s32.totalorder %s57, %s58
      %p67 = scmp.eq.s32.totalorder %s26, 0
      %p68 = por %p66, %p67
      %p69 = scmp.ne.s32.totalorder %s57, %s58
      %p70 = scmp.eq.s32.totalorder %s27, 1
      %p71 = por %p69, %p70
      %p73 = scmp.ne.s32.totalorder %s58, %s72
      %p74 = scmp.eq.s32.totalorder %s27, 0
      %p75 = por %p73, %p74
      %s77 = sadd.s32 %s76, 1
      %p80 = scmp.eq.s32.totalorder %s21, 1
      %p81 = scmp.ne.s32.totalorder %s76, %s78
      %p82 = scmp.eq.s32.totalorder %s21, 0
      %p83 = por %p81, %p82
      %p84 = scmp.ne.s32.totalorder %s76, %s78
      %p85 = scmp.eq.s32.totalorder %s26, 1
      %p86 = por %p84, %p85
      %p87 = scmp.ne.s32.totalorder %s78, %s79
      %p88 = scmp.eq.s32.totalorder %s26, 0
      %p89 = por %p87, %p88
      %p90 = scmp.ne.s32.totalorder %s78, %s79
      %p91 = scmp.eq.s32.totalorder %s27, 1
      %p92 = por %p90, %p91
      %p94 = scmp.ne.s32.totalorder %s79, %s93
      %p95 = scmp.eq.s32.totalorder %s27, 0
      %p96 = por %p94, %p95
      %s98 = sadd.s32 %s97, 1
      %p101 = scmp.eq.s32.totalorder %s21, 1
      %p102 = scmp.ne.s32.totalorder %s97, %s99
      %p103 = scmp.eq.s32.totalorder %s21, 0
      %p104 = por %p102, %p103
      %p105 = scmp.ne.s32.totalorder %s97, %s99
      %p106 = scmp.eq.s32.totalorder %s26, 1
      %p107 = por %p105, %p106
      %p108 = scmp.ne.s32.totalorder %s99, %s100
      %p109 = scmp.eq.s32.totalorder %s26, 0
      %p110 = por %p108, %p109
      %p111 = scmp.ne.s32.totalorder %s99, %s100
      %p112 = scmp.eq.s32.totalorder %s27, 1
      %p113 = por %p111, %p112
      %p115 = scmp.ne.s32.totalorder %s100, %s114
      %p116 = scmp.eq.s32.totalorder %s27, 0
      %p117 = por %p115, %p116
      %s119 = sadd.s32 %s118, 1
      %p122 = scmp.eq.s32.totalorder %s21, 1
      %p123 = scmp.ne.s32.totalorder %s118, %s120
      %p124 = scmp.eq.s32.totalorder %s21, 0
      %p125 = por %p123, %p124
      %p126 = scmp.ne.s32.totalorder %s118, %s120
      %p127 = scmp.eq.s32.totalorder %s26, 1
      %p128 = por %p126, %p127
      %p129 = scmp.ne.s32.totalorder %s120, %s121
      %p130 = scmp.eq.s32.totalorder %s26, 0
      %p131 = por %p129, %p130
      %p132 = scmp.ne.s32.totalorder %s120, %s121
      %p133 = scmp.eq.s32.totalorder %s27, 1
      %p134 = por %p132, %p133
      %p136 = scmp.ne.s32.totalorder %s121, %s135
      %p137 = scmp.eq.s32.totalorder %s27, 0
      %p138 = por %p136, %p137
      %s140 = sadd.s32 %s139, 1
      %p143 = scmp.eq.s32.totalorder %s21, 1
      %p144 = scmp.ne.s32.totalorder %s139, %s141
      %p145 = scmp.eq.s32.totalorder %s21, 0
      %p146 = por %p144, %p145
      %p147 = scmp.ne.s32.totalorder %s139, %s141
      %p148 = scmp.eq.s32.totalorder %s26, 1
      %p149 = por %p147, %p148
      %p150 = scmp.ne.s32.totalorder %s141, %s142
      %p151 = scmp.eq.s32.totalorder %s26, 0
      %p152 = por %p150, %p151
      %p153 = scmp.ne.s32.totalorder %s141, %s142
      %p154 = scmp.eq.s32.totalorder %s27, 1
      %p155 = por %p153, %p154
      %p157 = scmp.ne.s32.totalorder %s142, %s156
      %p158 = scmp.eq.s32.totalorder %s27, 0
      %p159 = por %p157, %p158
      %s161 = sadd.s32 %s160, 1
      %p164 = scmp.eq.s32.totalorder %s21, 1
      %p165 = scmp.ne.s32.totalorder %s160, %s162
      %p166 = scmp.eq.s32.totalorder %s21, 0
      %p167 = por %p165, %p166
      %p168 = scmp.ne.s32.totalorder %s160, %s162
      %p169 = scmp.eq.s32.totalorder %s26, 1
      %p170 = por %p168, %p169
      %p171 = scmp.ne.s32.totalorder %s162, %s163
      %p172 = scmp.eq.s32.totalorder %s26, 0
      %p173 = por %p171, %p172
      %p174 = scmp.ne.s32.totalorder %s162, %s163
      %p175 = scmp.eq.s32.totalorder %s27, 1
      %p176 = por %p174, %p175
      %p178 = scmp.ne.s32.totalorder %s163, %s177
      %p179 = scmp.eq.s32.totalorder %s27, 0
      %p180 = por %p178, %p179
      %s181 = ssub.s32 %s21, %s28
      %p182 = scmp.eq.s32.totalorder %s181, 0
      %s184 = sadd.s32 %s183, 1
      %s185 = scalar_select %p182, %s183, %s184
      %p188 = pneg %p182
      %p189 = scmp.eq.s32.totalorder %s21, 1
      %p190 = por %p188, %p189
      %p191 = scmp.ne.s32.totalorder %s183, %s186
      %p192 = scmp.eq.s32.totalorder %s21, 0
      %p193 = por %p191, %p192
      %p194 = scmp.ne.s32.totalorder %s183, %s186
      %p195 = scmp.eq.s32.totalorder %s26, 1
      %p196 = por %p194, %p195
      %p197 = scmp.ne.s32.totalorder %s186, %s187
      %p198 = scmp.eq.s32.totalorder %s26, 0
      %p199 = por %p197, %p198
      %p200 = scmp.ne.s32.totalorder %s186, %s187
      %p201 = scmp.eq.s32.totalorder %s27, 1
      %p202 = por %p200, %p201
      %p204 = scmp.ne.s32.totalorder %s187, %s203
      %p205 = scmp.eq.s32.totalorder %s27, 0
      %p206 = por %p204, %p205
      %s207 = ssub.s32 %s21, %s28
      %p208 = scmp.eq.s32.totalorder %s207, 0
      %s210 = sadd.s32 %s209, 1
      %s211 = scalar_select %p208, %s209, %s210
      %p214 = pneg %p208
      %p215 = scmp.eq.s32.totalorder %s21, 1
      %p216 = por %p214, %p215
      %p217 = scmp.ne.s32.totalorder %s209, %s212
      %p218 = scmp.eq.s32.totalorder %s21, 0
      %p219 = por %p217, %p218
      %p220 = scmp.ne.s32.totalorder %s209, %s212
      %p221 = scmp.eq.s32.totalorder %s26, 1
      %p222 = por %p220, %p221
      %p223 = scmp.ne.s32.totalorder %s212, %s213
      %p224 = scmp.eq.s32.totalorder %s26, 0
      %p225 = por %p223, %p224
      %p226 = scmp.ne.s32.totalorder %s212, %s213
      %p227 = scmp.eq.s32.totalorder %s27, 1
      %p228 = por %p226, %p227
      %p230 = scmp.ne.s32.totalorder %s213, %s229
      %p231 = scmp.eq.s32.totalorder %s27, 0
      %p232 = por %p230, %p231
      %p233 = scmp.le.s32.totalorder 1, %s21
      %p234 = scmp.lt.s32.totalorder %s21, 3
      %p235 = pnand %p233, %p234
      %p236 = pneg %p235
      // Predicated region
      $region9: #{tpu_custom_call.1} parent=5 // pred_check
        _
      $region10: #{tpu_custom_call.1} parent=5 // pred_check_branch
        %238 = sbr.rel (%p235) target = $region12
      $region11: #{tpu_custom_call.1} parent=5 // pred_region
        %s239 = ssub.s32 %s21, 1
        // Predicated region
        $region13: #{tpu_custom_call.1} parent=11 // pred_check
          %p240 = pneg %p68
        $region14: #{tpu_custom_call.1} parent=11 // pred_check_branch
          %242 = sbr.rel (%p240) target = $region16
        $region15: #{tpu_custom_call.1} parent=11 // pred_region
          _
        $region16: #{tpu_custom_call.1} parent=11 // pred_fallthru
          _
        // Predicated region
        $region17: #{tpu_custom_call.1} parent=11 // pred_check
          %p243 = pneg %p89
        $region18: #{tpu_custom_call.1} parent=11 // pred_check_branch
          %245 = sbr.rel (%p243) target = $region20
        $region19: #{tpu_custom_call.1} parent=11 // pred_region
          _
        $region20: #{tpu_custom_call.1} parent=11 // pred_fallthru
          _
        // Predicated region
        $region21: #{tpu_custom_call.1} parent=11 // pred_check
          %p246 = pneg %p110
        $region22: #{tpu_custom_call.1} parent=11 // pred_check_branch
          %248 = sbr.rel (%p246) target = $region24
        $region23: #{tpu_custom_call.1} parent=11 // pred_region
          _
        $region24: #{tpu_custom_call.1} parent=11 // pred_fallthru
          _
        // Predicated region
        $region25: #{tpu_custom_call.1} parent=11 // pred_check
          %p249 = pneg %p131
        $region26: #{tpu_custom_call.1} parent=11 // pred_check_branch
          %251 = sbr.rel (%p249) target = $region28
        $region27: #{tpu_custom_call.1} parent=11 // pred_region
          _
        $region28: #{tpu_custom_call.1} parent=11 // pred_fallthru
          _
        // Predicated region
        $region29: #{tpu_custom_call.1} parent=11 // pred_check
          %p252 = pneg %p152
        $region30: #{tpu_custom_call.1} parent=11 // pred_check_branch
          %254 = sbr.rel (%p252) target = $region32
        $region31: #{tpu_custom_call.1} parent=11 // pred_region
          _
        $region32: #{tpu_custom_call.1} parent=11 // pred_fallthru
          _
        // Predicated region
        $region33: #{tpu_custom_call.1} parent=11 // pred_check
          %p255 = pneg %p173
        $region34: #{tpu_custom_call.1} parent=11 // pred_check_branch
          %257 = sbr.rel (%p255) target = $region36
        $region35: #{tpu_custom_call.1} parent=11 // pred_region
          _
        $region36: #{tpu_custom_call.1} parent=11 // pred_fallthru
          _
      $region12: #{tpu_custom_call.1} parent=5 // pred_fallthru
        _
      %p258 = scmp.lt.s32.totalorder %s21, 2
      // Predicated region
      $region37: #{tpu_custom_call.1} parent=5 // pred_check
        %p259 = pneg %p258
      $region38: #{tpu_custom_call.1} parent=5 // pred_check_branch
        %261 = sbr.rel (%p259) target = $region40
      $region39: #{tpu_custom_call.1} parent=5 // pred_region
        // Predicated region
        $region41: #{tpu_custom_call.1} parent=39 // pred_check
          %p262 = pneg %p41
        $region42: #{tpu_custom_call.1} parent=39 // pred_check_branch
          %264 = sbr.rel (%p262) target = $region44
        $region43: #{tpu_custom_call.1} parent=39 // pred_region
          %p265 = scmp.lt.s32.totalorder %s21, 1
          %s266 = scalar_select %p265, %s21, 1
          %s267 = smul.addr %s266, 8
          %s268 = scalar_lea.vmem %s0, %s267
        $region44: #{tpu_custom_call.1} parent=39 // pred_fallthru
          _
      $region40: #{tpu_custom_call.1} parent=5 // pred_fallthru
        _
      %p269 = scmp.le.s32.totalorder 1, %s21
      %p270 = scmp.lt.s32.totalorder %s21, 3
      %p271 = pnand %p269, %p270
      %p272 = pneg %p271
      // Predicated region
      $region45: #{tpu_custom_call.1} parent=5 // pred_check
        _
      $region46: #{tpu_custom_call.1} parent=5 // pred_check_branch
        %274 = sbr.rel (%p271) target = $region48
      $region47: #{tpu_custom_call.1} parent=5 // pred_region
        %s275 = ssub.s32 %s21, 1
        %p276 = scmp.lt.s32.totalorder %s26, 1
        %s277 = scalar_select %p276, %s26, 1
        %s278 = smul.addr %s277, 8
        %s279 = scalar_lea.vmem %s0, %s278
        %p280 = pneg %p47
        %p281 = pneg %p44
        %p282 = pneg %p68
        %p283 = pneg %p65
        %p284 = pneg %p89
        %p285 = pneg %p86
        %p286 = pneg %p110
        %p287 = pneg %p107
        %p288 = pneg %p131
        %p289 = pneg %p128
        %p290 = pneg %p152
        %p291 = pneg %p149
        %p292 = pneg %p173
        %p293 = pneg %p170
        %p294 = pneg %p199
        %p295 = pneg %p196
        %s296 = sand.u32 %s186, 1
        %s297 = scalar_lea.sflag [#allocation3], %s296
        %s298 = sand.u32 %s186, 1
        %s299 = smul.addr %s298, 8
        %s300 = scalar_lea.vmem [#allocation2], %s299
        %p301 = pneg %p225
        %p302 = pneg %p222
        %s303 = sand.u32 %s212, 1
        %s304 = scalar_lea.sflag [#allocation5], %s303
        %s305 = sand.u32 %s212, 1
        %s306 = smul.addr %s305, 8
        %s307 = scalar_lea.vmem [#allocation4], %s306
        %p308 = scmp.lt.s32.totalorder %s26, 1
        %s309 = scalar_select %p308, %s26, 1
        %s310 = smul.addr %s309, 8
        %s311 = scalar_lea.vmem %s0, %s310
        %v312 = vld [vmem:[%s311] sm:$0xff]
        %v313 = vld [vmem:[%s1] sm:$0xff]
        %v314 = vld [vmem:[%s1 + $0x8] sm:$0xff]
        %v315 = vld [vmem:[%s1 + $0x10] sm:$0xff]
        %v316 = vld [vmem:[%s1 + $0x18] sm:$0xff]
        %v317 = vld [vmem:[%s2] sm:$0x1]
        %v319 = vlaneseq
        %v320 = vshrl.u32 %v319, 7
        %v321 = vsub.s32 0, %v320
        %v322 = vrot.slane %v317, %v321
        %vm324 = vcmask 261120
        %v326 = vsel %vm324, %v312, 0
        %328 = vmatprep.subr.mxu0 0.0
        %329 = vmatpush1.msra.mxu0 %v313
        %330 = vmatprep.subr.mxu0 0.0
        %331 = vmatpush1.msra.mxu0 %v314
        %332 = vmatprep.subr.mxu0 0.0
        %333 = vmatpush1.msra.mxu0 %v315
        %334 = vmatprep.subr.mxu0 0.0
        %335 = vmatpush1.msra.mxu0 %v316
        %336 = vmatprep.subr.mxu0 0.0
        %337 = vmatpush1.msra.mxu0 0.0
        %338 = vmatprep.subr.mxu0 0.0
        %339 = vmatpush1.msra.mxu0 0.0
        %340 = vmatprep.subr.mxu0 0.0
        %341 = vmatpush1.msra.mxu0 0.0
        %342 = vmatprep.subr.mxu0 0.0
        %343 = vmatpush1.msra.mxu0 0.0
        %344 = vmatprep.subr.mxu0 0.0
        %345 = vmatpush1.msra.mxu0 0.0
        %346 = vmatprep.subr.mxu0 0.0
        %347 = vmatpush1.msra.mxu0 0.0
        %348 = vmatprep.subr.mxu0 0.0
        %349 = vmatpush1.msra.mxu0 0.0
        %350 = vmatprep.subr.mxu0 0.0
        %351 = vmatpush1.msra.mxu0 0.0
        %352 = vmatprep.subr.mxu0 0.0
        %353 = vmatpush1.msra.mxu0 0.0
        %354 = vmatprep.subr.mxu0 0.0
        %355 = vmatpush1.msra.mxu0 0.0
        %356 = vmatprep.subr.mxu0 0.0
        %357 = vmatpush1.msra.mxu0 0.0
        %358 = vmatprep.subr.mxu0 0.0
        %359 = vmatpush1.msra.mxu0 0.0
        %360 = vmatprep.subr.mxu0 0.0
        %361 = vmatpush1.msra.mxu0 0.0
        %362 = vmatprep.subr.mxu0 0.0
        %363 = vmatpush1.msra.mxu0 0.0
        %364 = vmatprep.subr.mxu0 0.0
        %365 = vmatpush1.msra.mxu0 0.0
        %366 = vmatprep.subr.mxu0 0.0
        %367 = vmatpush1.msra.mxu0 0.0
        %368 = vmatprep.subr.mxu0 0.0
        %369 = vmatpush1.msra.mxu0 0.0
        %370 = vmatprep.subr.mxu0 0.0
        %371 = vmatpush1.msra.mxu0 0.0
        %372 = vmatprep.subr.mxu0 0.0
        %373 = vmatpush1.msra.mxu0 0.0
        %374 = vmatprep.subr.mxu0 0.0
        %375 = vmatpush1.msra.mxu0 0.0
        %376 = vmatprep.subr.mxu0 0.0
        %377 = vmatpush1.msra.mxu0 0.0
        %378 = vmatprep.subr.mxu0 0.0
        %379 = vmatpush1.msra.mxu0 0.0
        %380 = vmatprep.subr.mxu0 0.0
        %381 = vmatpush1.msra.mxu0 0.0
        %382 = vmatprep.subr.mxu0 0.0
        %383 = vmatpush1.msra.mxu0 0.0
        %384 = vmatprep.subr.mxu0 0.0
        %385 = vmatpush1.msra.mxu0 0.0
        %386 = vmatprep.subr.mxu0 0.0
        %387 = vmatpush1.msra.mxu0 0.0
        %388 = vmatprep.subr.mxu0 0.0
        %389 = vmatpush1.msra.mxu0 0.0
        %390 = vmatprep.subr.mxu0 0.0
        %391 = vmatpush1.msra.mxu0 0.0
        %392 = vmatprep.mubr.f32.mxu0 0.0
        %393 = vmatmul.mubr.f32.gmra.mrb[0].mxu0 %v326
        %v394 = vpop.f32.mrb[0].mxu0
        %v395 = vadd.f32 %v322, %v394
        %v396 = vpop.f32.mrb[0].mxu0
        %397 = vdwg.mxu0
        %v398 = vmul.f32 %v395, 0.35355338
        %400 = vrot.lane.b32.xlu0 %v395, 120
        %v401 = vpop.permute.xlu0 %400
        %vm402 = vcmask 64512
        %v404 = vsel %vm402, %v398, 0
        %v406 = vsel %vm402, %v401, 0
        %408 = vmatprep.subr.mxu0 0.0
        %409 = vmatpush1.xpose.msra.mxu0 %v406
        %410 = vmatprep.subr.mxu0 0.0
        %411 = vmatpush1.xpose.msra.mxu0 0.0
        %412 = vmatprep.subr.mxu0 0.0
        %413 = vmatpush1.xpose.msra.mxu0 0.0
        %414 = vmatprep.subr.mxu0 0.0
        %415 = vmatpush1.xpose.msra.mxu0 0.0
        %416 = vmatprep.subr.mxu0 0.0
        %417 = vmatpush1.xpose.msra.mxu0 0.0
        %418 = vmatprep.subr.mxu0 0.0
        %419 = vmatpush1.xpose.msra.mxu0 0.0
        %420 = vmatprep.subr.mxu0 0.0
        %421 = vmatpush1.xpose.msra.mxu0 0.0
        %422 = vmatprep.subr.mxu0 0.0
        %423 = vmatpush1.xpose.msra.mxu0 0.0
        %424 = vmatprep.subr.mxu0 0.0
        %425 = vmatpush1.xpose.msra.mxu0 0.0
        %426 = vmatprep.subr.mxu0 0.0
        %427 = vmatpush1.xpose.msra.mxu0 0.0
        %428 = vmatprep.subr.mxu0 0.0
        %429 = vmatpush1.xpose.msra.mxu0 0.0
        %430 = vmatprep.subr.mxu0 0.0
        %431 = vmatpush1.xpose.msra.mxu0 0.0
        %432 = vmatprep.subr.mxu0 0.0
        %433 = vmatpush1.xpose.msra.mxu0 0.0
        %434 = vmatprep.subr.mxu0 0.0
        %435 = vmatpush1.xpose.msra.mxu0 0.0
        %436 = vmatprep.subr.mxu0 0.0
        %437 = vmatpush1.xpose.msra.mxu0 0.0
        %438 = vmatprep.subr.mxu0 0.0
        %439 = vmatpush1.xpose.msra.mxu0 0.0
        %440 = vmatprep.subr.mxu0 0.0
        %441 = vmatpush1.xpose.msra.mxu0 0.0
        %442 = vmatprep.subr.mxu0 0.0
        %443 = vmatpush1.xpose.msra.mxu0 0.0
        %444 = vmatprep.subr.mxu0 0.0
        %445 = vmatpush1.xpose.msra.mxu0 0.0
        %446 = vmatprep.subr.mxu0 0.0
        %447 = vmatpush1.xpose.msra.mxu0 0.0
        %448 = vmatprep.subr.mxu0 0.0
        %449 = vmatpush1.xpose.msra.mxu0 0.0
        %450 = vmatprep.subr.mxu0 0.0
        %451 = vmatpush1.xpose.msra.mxu0 0.0
        %452 = vmatprep.subr.mxu0 0.0
        %453 = vmatpush1.xpose.msra.mxu0 0.0
        %454 = vmatprep.subr.mxu0 0.0
        %455 = vmatpush1.xpose.msra.mxu0 0.0
        %456 = vmatprep.subr.mxu0 0.0
        %457 = vmatpush1.xpose.msra.mxu0 0.0
        %458 = vmatprep.subr.mxu0 0.0
        %459 = vmatpush1.xpose.msra.mxu0 0.0
        %460 = vmatprep.subr.mxu0 0.0
        %461 = vmatpush1.xpose.msra.mxu0 0.0
        %462 = vmatprep.subr.mxu0 0.0
        %463 = vmatpush1.xpose.msra.mxu0 0.0
        %464 = vmatprep.subr.mxu0 0.0
        %465 = vmatpush1.xpose.msra.mxu0 0.0
        %466 = vmatprep.subr.mxu0 0.0
        %467 = vmatpush1.xpose.msra.mxu0 0.0
        %468 = vmatprep.subr.mxu0 0.0
        %469 = vmatpush1.xpose.msra.mxu0 0.0
        %470 = vmatprep.subr.mxu0 0.0
        %471 = vmatpush1.xpose.msra.mxu0 0.0
        %472 = vmatprep.mubr.f32.mxu0 0.0
        %473 = vmatmul.mubr.f32.gmra.mrb[0].mxu0 %v404
        %v474 = vpop.f32.mrb[0].mxu0
        %v475 = vadd.f32 0.0, %v474
        %v476 = vpop.f32.mrb[0].mxu0
        %477 = vdwg.mxu0
        %v478 = vsel %vm402, %v475, -inf
        %479 = vmax.xlane.f32.xlu0 %v478
        %v480 = vpop.xlane.xlu0 %479
        %v481 = vsub.f32 %v475, %v480
        %v482 = vmul.f32 %v481, 1.442695
        %v483 = vpow.pop %v482
        %v484 = vsel %vm402, %v483, 0.0
        %485 = vadd.xlane.f32.xlu0 %v484
        %v486 = vpop.xlane.xlu0 %485
        %v487 = vrcp.pop %v486
        %v488 = vmul.f32 %v483, %v487
        %489 = vrot.lane.b32.xlu0 %v395, 112
        %v490 = vpop.permute.xlu0 %489
        %v493 = vsel %vm402, %v488, 0
        %495 = vmatprep.subr.mxu0 0.0
        %496 = vmatpush1.msra.mxu0 %v490
        %497 = vmatprep.subr.mxu0 0.0
        %498 = vmatpush1.msra.mxu0 0.0
        %499 = vmatprep.subr.mxu0 0.0
        %500 = vmatpush1.msra.mxu0 0.0
        %501 = vmatprep.subr.mxu0 0.0
        %502 = vmatpush1.msra.mxu0 0.0
        %503 = vmatprep.subr.mxu0 0.0
        %504 = vmatpush1.msra.mxu0 0.0
        %505 = vmatprep.subr.mxu0 0.0
        %506 = vmatpush1.msra.mxu0 0.0
        %507 = vmatprep.subr.mxu0 0.0
        %508 = vmatpush1.msra.mxu0 0.0
        %509 = vmatprep.subr.mxu0 0.0
        %510 = vmatpush1.msra.mxu0 0.0
        %511 = vmatprep.subr.mxu0 0.0
        %512 = vmatpush1.msra.mxu0 0.0
        %513 = vmatprep.subr.mxu0 0.0
        %514 = vmatpush1.msra.mxu0 0.0
        %515 = vmatprep.subr.mxu0 0.0
        %516 = vmatpush1.msra.mxu0 0.0
        %517 = vmatprep.subr.mxu0 0.0
        %518 = vmatpush1.msra.mxu0 0.0
        %519 = vmatprep.subr.mxu0 0.0
        %520 = vmatpush1.msra.mxu0 0.0
        %521 = vmatprep.subr.mxu0 0.0
        %522 = vmatpush1.msra.mxu0 0.0
        %523 = vmatprep.subr.mxu0 0.0
        %524 = vmatpush1.msra.mxu0 0.0
        %525 = vmatprep.subr.mxu0 0.0
        %526 = vmatpush1.msra.mxu0 0.0
        %527 = vmatprep.subr.mxu0 0.0
        %528 = vmatpush1.msra.mxu0 0.0
        %529 = vmatprep.subr.mxu0 0.0
        %530 = vmatpush1.msra.mxu0 0.0
        %531 = vmatprep.subr.mxu0 0.0
        %532 = vmatpush1.msra.mxu0 0.0
        %533 = vmatprep.subr.mxu0 0.0
        %534 = vmatpush1.msra.mxu0 0.0
        %535 = vmatprep.subr.mxu0 0.0
        %536 = vmatpush1.msra.mxu0 0.0
        %537 = vmatprep.subr.mxu0 0.0
        %538 = vmatpush1.msra.mxu0 0.0
        %539 = vmatprep.subr.mxu0 0.0
        %540 = vmatpush1.msra.mxu0 0.0
        %541 = vmatprep.subr.mxu0 0.0
        %542 = vmatpush1.msra.mxu0 0.0
        %543 = vmatprep.subr.mxu0 0.0
        %544 = vmatpush1.msra.mxu0 0.0
        %545 = vmatprep.subr.mxu0 0.0
        %546 = vmatpush1.msra.mxu0 0.0
        %547 = vmatprep.subr.mxu0 0.0
        %548 = vmatpush1.msra.mxu0 0.0
        %549 = vmatprep.subr.mxu0 0.0
        %550 = vmatpush1.msra.mxu0 0.0
        %551 = vmatprep.subr.mxu0 0.0
        %552 = vmatpush1.msra.mxu0 0.0
        %553 = vmatprep.subr.mxu0 0.0
        %554 = vmatpush1.msra.mxu0 0.0
        %555 = vmatprep.subr.mxu0 0.0
        %556 = vmatpush1.msra.mxu0 0.0
        %557 = vmatprep.subr.mxu0 0.0
        %558 = vmatpush1.msra.mxu0 0.0
        %559 = vmatprep.mubr.f32.mxu0 0.0
        %560 = vmatmul.mubr.f32.gmra.mrb[0].mxu0 %v493
        %v561 = vpop.f32.mrb[0].mxu0
        %v562 = vadd.f32 0.0, %v561
        %v563 = vpop.f32.mrb[0].mxu0
        %564 = vdwg.mxu0
        %v565 = vld [vmem:[%s3] sm:$0xff]
        %v566 = vadd.f32 %v488, 0.0
        %s567 = scalar_lea.vmem %s1, 32
        %v568 = vld [vmem:[%s567] sm:$0xff]
        %v569 = vld [vmem:[%s567 + $0x8] sm:$0xff]
        %v570 = vld [vmem:[%s567 + $0x10] sm:$0xff]
        %v571 = vld [vmem:[%s567 + $0x18] sm:$0xff]
        %s572 = scalar_lea.vmem %s2, 1
        %v573 = vld [vmem:[%s572] sm:$0x1]
        %v575 = vlaneseq
        %v576 = vshrl.u32 %v575, 7
        %v577 = vsub.s32 0, %v576
        %v578 = vrot.slane %v573, %v577
        %580 = vmatprep.subr.mxu0 0.0
        %581 = vmatpush1.msra.mxu0 %v568
        %582 = vmatprep.subr.mxu0 0.0
        %583 = vmatpush1.msra.mxu0 %v569
        %584 = vmatprep.subr.mxu0 0.0
        %585 = vmatpush1.msra.mxu0 %v570
        %586 = vmatprep.subr.mxu0 0.0
        %587 = vmatpush1.msra.mxu0 %v571
        %588 = vmatprep.subr.mxu0 0.0
        %589 = vmatpush1.msra.mxu0 0.0
        %590 = vmatprep.subr.mxu0 0.0
        %591 = vmatpush1.msra.mxu0 0.0
        %592 = vmatprep.subr.mxu0 0.0
        %593 = vmatpush1.msra.mxu0 0.0
        %594 = vmatprep.subr.mxu0 0.0
        %595 = vmatpush1.msra.mxu0 0.0
        %596 = vmatprep.subr.mxu0 0.0
        %597 = vmatpush1.msra.mxu0 0.0
        %598 = vmatprep.subr.mxu0 0.0
        %599 = vmatpush1.msra.mxu0 0.0
        %600 = vmatprep.subr.mxu0 0.0
        %601 = vmatpush1.msra.mxu0 0.0
        %602 = vmatprep.subr.mxu0 0.0
        %603 = vmatpush1.msra.mxu0 0.0
        %604 = vmatprep.subr.mxu0 0.0
        %605 = vmatpush1.msra.mxu0 0.0
        %606 = vmatprep.subr.mxu0 0.0
        %607 = vmatpush1.msra.mxu0 0.0
        %608 = vmatprep.subr.mxu0 0.0
        %609 = vmatpush1.msra.mxu0 0.0
        %610 = vmatprep.subr.mxu0 0.0
        %611 = vmatpush1.msra.mxu0 0.0
        %612 = vmatprep.subr.mxu0 0.0
        %613 = vmatpush1.msra.mxu0 0.0
        %614 = vmatprep.subr.mxu0 0.0
        %615 = vmatpush1.msra.mxu0 0.0
        %616 = vmatprep.subr.mxu0 0.0
        %617 = vmatpush1.msra.mxu0 0.0
        %618 = vmatprep.subr.mxu0 0.0
        %619 = vmatpush1.msra.mxu0 0.0
        %620 = vmatprep.subr.mxu0 0.0
        %621 = vmatpush1.msra.mxu0 0.0
        %622 = vmatprep.subr.mxu0 0.0
        %623 = vmatpush1.msra.mxu0 0.0
        %624 = vmatprep.subr.mxu0 0.0
        %625 = vmatpush1.msra.mxu0 0.0
        %626 = vmatprep.subr.mxu0 0.0
        %627 = vmatpush1.msra.mxu0 0.0
        %628 = vmatprep.subr.mxu0 0.0
        %629 = vmatpush1.msra.mxu0 0.0
        %630 = vmatprep.subr.mxu0 0.0
        %631 = vmatpush1.msra.mxu0 0.0
        %632 = vmatprep.subr.mxu0 0.0
        %633 = vmatpush1.msra.mxu0 0.0
        %634 = vmatprep.subr.mxu0 0.0
        %635 = vmatpush1.msra.mxu0 0.0
        %636 = vmatprep.subr.mxu0 0.0
        %637 = vmatpush1.msra.mxu0 0.0
        %638 = vmatprep.subr.mxu0 0.0
        %639 = vmatpush1.msra.mxu0 0.0
        %640 = vmatprep.subr.mxu0 0.0
        %641 = vmatpush1.msra.mxu0 0.0
        %642 = vmatprep.subr.mxu0 0.0
        %643 = vmatpush1.msra.mxu0 0.0
        %644 = vmatprep.mubr.f32.mxu0 0.0
        %645 = vmatmul.mubr.f32.gmra.mrb[0].mxu0 %v326
        %v646 = vpop.f32.mrb[0].mxu0
        %v647 = vadd.f32 %v578, %v646
        %v648 = vpop.f32.mrb[0].mxu0
        %649 = vdwg.mxu0
        %v650 = vmul.f32 %v647, 0.35355338
        %652 = vrot.lane.b32.xlu0 %v647, 120
        %v653 = vpop.permute.xlu0 %652
        %v655 = vsel %vm402, %v650, 0
        %v657 = vsel %vm402, %v653, 0
        %659 = vmatprep.subr.mxu0 0.0
        %660 = vmatpush1.xpose.msra.mxu0 %v657
        %661 = vmatprep.subr.mxu0 0.0
        %662 = vmatpush1.xpose.msra.mxu0 0.0
        %663 = vmatprep.subr.mxu0 0.0
        %664 = vmatpush1.xpose.msra.mxu0 0.0
        %665 = vmatprep.subr.mxu0 0.0
        %666 = vmatpush1.xpose.msra.mxu0 0.0
        %667 = vmatprep.subr.mxu0 0.0
        %668 = vmatpush1.xpose.msra.mxu0 0.0
        %669 = vmatprep.subr.mxu0 0.0
        %670 = vmatpush1.xpose.msra.mxu0 0.0
        %671 = vmatprep.subr.mxu0 0.0
        %672 = vmatpush1.xpose.msra.mxu0 0.0
        %673 = vmatprep.subr.mxu0 0.0
        %674 = vmatpush1.xpose.msra.mxu0 0.0
        %675 = vmatprep.subr.mxu0 0.0
        %676 = vmatpush1.xpose.msra.mxu0 0.0
        %677 = vmatprep.subr.mxu0 0.0
        %678 = vmatpush1.xpose.msra.mxu0 0.0
        %679 = vmatprep.subr.mxu0 0.0
        %680 = vmatpush1.xpose.msra.mxu0 0.0
        %681 = vmatprep.subr.mxu0 0.0
        %682 = vmatpush1.xpose.msra.mxu0 0.0
        %683 = vmatprep.subr.mxu0 0.0
        %684 = vmatpush1.xpose.msra.mxu0 0.0
        %685 = vmatprep.subr.mxu0 0.0
        %686 = vmatpush1.xpose.msra.mxu0 0.0
        %687 = vmatprep.subr.mxu0 0.0
        %688 = vmatpush1.xpose.msra.mxu0 0.0
        %689 = vmatprep.subr.mxu0 0.0
        %690 = vmatpush1.xpose.msra.mxu0 0.0
        %691 = vmatprep.subr.mxu0 0.0
        %692 = vmatpush1.xpose.msra.mxu0 0.0
        %693 = vmatprep.subr.mxu0 0.0
        %694 = vmatpush1.xpose.msra.mxu0 0.0
        %695 = vmatprep.subr.mxu0 0.0
        %696 = vmatpush1.xpose.msra.mxu0 0.0
        %697 = vmatprep.subr.mxu0 0.0
        %698 = vmatpush1.xpose.msra.mxu0 0.0
        %699 = vmatprep.subr.mxu0 0.0
        %700 = vmatpush1.xpose.msra.mxu0 0.0
        %701 = vmatprep.subr.mxu0 0.0
        %702 = vmatpush1.xpose.msra.mxu0 0.0
        %703 = vmatprep.subr.mxu0 0.0
        %704 = vmatpush1.xpose.msra.mxu0 0.0
        %705 = vmatprep.subr.mxu0 0.0
        %706 = vmatpush1.xpose.msra.mxu0 0.0
        %707 = vmatprep.subr.mxu0 0.0
        %708 = vmatpush1.xpose.msra.mxu0 0.0
        %709 = vmatprep.subr.mxu0 0.0
        %710 = vmatpush1.xpose.msra.mxu0 0.0
        %711 = vmatprep.subr.mxu0 0.0
        %712 = vmatpush1.xpose.msra.mxu0 0.0
        %713 = vmatprep.subr.mxu0 0.0
        %714 = vmatpush1.xpose.msra.mxu0 0.0
        %715 = vmatprep.subr.mxu0 0.0
        %716 = vmatpush1.xpose.msra.mxu0 0.0
        %717 = vmatprep.subr.mxu0 0.0
        %718 = vmatpush1.xpose.msra.mxu0 0.0
        %719 = vmatprep.subr.mxu0 0.0
        %720 = vmatpush1.xpose.msra.mxu0 0.0
        %721 = vmatprep.subr.mxu0 0.0
        %722 = vmatpush1.xpose.msra.mxu0 0.0
        %723 = vmatprep.mubr.f32.mxu0 0.0
        %724 = vmatmul.mubr.f32.gmra.mrb[0].mxu0 %v655
        %v725 = vpop.f32.mrb[0].mxu0
        %v726 = vadd.f32 0.0, %v725
        %v727 = vpop.f32.mrb[0].mxu0
        %728 = vdwg.mxu0
        %v729 = vsel %vm402, %v726, -inf
        %730 = vmax.xlane.f32.xlu0 %v729
        %v731 = vpop.xlane.xlu0 %730
        %v732 = vsub.f32 %v726, %v731
        %v733 = vmul.f32 %v732, 1.442695
        %v734 = vpow.pop %v733
        %v735 = vsel %vm402, %v734, 0.0
        %736 = vadd.xlane.f32.xlu0 %v735
        %v737 = vpop.xlane.xlu0 %736
        %v738 = vrcp.pop %v737
        %v739 = vmul.f32 %v734, %v738
        %740 = vrot.lane.b32.xlu0 %v647, 112
        %v741 = vpop.permute.xlu0 %740
        %v744 = vsel %vm402, %v739, 0
        %746 = vmatprep.subr.mxu0 0.0
        %747 = vmatpush1.msra.mxu0 %v741
        %748 = vmatprep.subr.mxu0 0.0
        %749 = vmatpush1.msra.mxu0 0.0
        %750 = vmatprep.subr.mxu0 0.0
        %751 = vmatpush1.msra.mxu0 0.0
        %752 = vmatprep.subr.mxu0 0.0
        %753 = vmatpush1.msra.mxu0 0.0
        %754 = vmatprep.subr.mxu0 0.0
        %755 = vmatpush1.msra.mxu0 0.0
        %756 = vmatprep.subr.mxu0 0.0
        %757 = vmatpush1.msra.mxu0 0.0
        %758 = vmatprep.subr.mxu0 0.0
        %759 = vmatpush1.msra.mxu0 0.0
        %760 = vmatprep.subr.mxu0 0.0
        %761 = vmatpush1.msra.mxu0 0.0
        %762 = vmatprep.subr.mxu0 0.0
        %763 = vmatpush1.msra.mxu0 0.0
        %764 = vmatprep.subr.mxu0 0.0
        %765 = vmatpush1.msra.mxu0 0.0
        %766 = vmatprep.subr.mxu0 0.0
        %767 = vmatpush1.msra.mxu0 0.0
        %768 = vmatprep.subr.mxu0 0.0
        %769 = vmatpush1.msra.mxu0 0.0
        %770 = vmatprep.subr.mxu0 0.0
        %771 = vmatpush1.msra.mxu0 0.0
        %772 = vmatprep.subr.mxu0 0.0
        %773 = vmatpush1.msra.mxu0 0.0
        %774 = vmatprep.subr.mxu0 0.0
        %775 = vmatpush1.msra.mxu0 0.0
        %776 = vmatprep.subr.mxu0 0.0
        %777 = vmatpush1.msra.mxu0 0.0
        %778 = vmatprep.subr.mxu0 0.0
        %779 = vmatpush1.msra.mxu0 0.0
        %780 = vmatprep.subr.mxu0 0.0
        %781 = vmatpush1.msra.mxu0 0.0
        %782 = vmatprep.subr.mxu0 0.0
        %783 = vmatpush1.msra.mxu0 0.0
        %784 = vmatprep.subr.mxu0 0.0
        %785 = vmatpush1.msra.mxu0 0.0
        %786 = vmatprep.subr.mxu0 0.0
        %787 = vmatpush1.msra.mxu0 0.0
        %788 = vmatprep.subr.mxu0 0.0
        %789 = vmatpush1.msra.mxu0 0.0
        %790 = vmatprep.subr.mxu0 0.0
        %791 = vmatpush1.msra.mxu0 0.0
        %792 = vmatprep.subr.mxu0 0.0
        %793 = vmatpush1.msra.mxu0 0.0
        %794 = vmatprep.subr.mxu0 0.0
        %795 = vmatpush1.msra.mxu0 0.0
        %796 = vmatprep.subr.mxu0 0.0
        %797 = vmatpush1.msra.mxu0 0.0
        %798 = vmatprep.subr.mxu0 0.0
        %799 = vmatpush1.msra.mxu0 0.0
        %800 = vmatprep.subr.mxu0 0.0
        %801 = vmatpush1.msra.mxu0 0.0
        %802 = vmatprep.subr.mxu0 0.0
        %803 = vmatpush1.msra.mxu0 0.0
        %804 = vmatprep.subr.mxu0 0.0
        %805 = vmatpush1.msra.mxu0 0.0
        %806 = vmatprep.subr.mxu0 0.0
        %807 = vmatpush1.msra.mxu0 0.0
        %808 = vmatprep.subr.mxu0 0.0
        %809 = vmatpush1.msra.mxu0 0.0
        %810 = vmatprep.mubr.f32.mxu0 0.0
        %811 = vmatmul.mubr.f32.gmra.mrb[0].mxu0 %v744
        %v812 = vpop.f32.mrb[0].mxu0
        %v813 = vadd.f32 0.0, %v812
        %v814 = vpop.f32.mrb[0].mxu0
        %815 = vdwg.mxu0
        %s816 = scalar_lea.vmem %s3, 8
        %v817 = vld [vmem:[%s816] sm:$0xff]
        %v819 = vsel %vm402, %v813, 0
        %821 = vmatprep.subr.mxu0 0.0
        %822 = vmatpush1.msra.mxu0 %v817
        %823 = vmatprep.subr.mxu0 0.0
        %824 = vmatpush1.msra.mxu0 0.0
        %825 = vmatprep.subr.mxu0 0.0
        %826 = vmatpush1.msra.mxu0 0.0
        %827 = vmatprep.subr.mxu0 0.0
        %828 = vmatpush1.msra.mxu0 0.0
        %829 = vmatprep.subr.mxu0 0.0
        %830 = vmatpush1.msra.mxu0 0.0
        %831 = vmatprep.subr.mxu0 0.0
        %832 = vmatpush1.msra.mxu0 0.0
        %833 = vmatprep.subr.mxu0 0.0
        %834 = vmatpush1.msra.mxu0 0.0
        %835 = vmatprep.subr.mxu0 0.0
        %836 = vmatpush1.msra.mxu0 0.0
        %837 = vmatprep.subr.mxu0 0.0
        %838 = vmatpush1.msra.mxu0 0.0
        %839 = vmatprep.subr.mxu0 0.0
        %840 = vmatpush1.msra.mxu0 0.0
        %841 = vmatprep.subr.mxu0 0.0
        %842 = vmatpush1.msra.mxu0 0.0
        %843 = vmatprep.subr.mxu0 0.0
        %844 = vmatpush1.msra.mxu0 0.0
        %845 = vmatprep.subr.mxu0 0.0
        %846 = vmatpush1.msra.mxu0 0.0
        %847 = vmatprep.subr.mxu0 0.0
        %848 = vmatpush1.msra.mxu0 0.0
        %849 = vmatprep.subr.mxu0 0.0
        %850 = vmatpush1.msra.mxu0 0.0
        %851 = vmatprep.subr.mxu0 0.0
        %852 = vmatpush1.msra.mxu0 0.0
        %853 = vmatprep.subr.mxu0 0.0
        %854 = vmatpush1.msra.mxu0 0.0
        %855 = vmatprep.subr.mxu0 0.0
        %856 = vmatpush1.msra.mxu0 0.0
        %857 = vmatprep.subr.mxu0 0.0
        %858 = vmatpush1.msra.mxu0 0.0
        %859 = vmatprep.subr.mxu0 0.0
        %860 = vmatpush1.msra.mxu0 0.0
        %861 = vmatprep.subr.mxu0 0.0
        %862 = vmatpush1.msra.mxu0 0.0
        %863 = vmatprep.subr.mxu0 0.0
        %864 = vmatpush1.msra.mxu0 0.0
        %865 = vmatprep.subr.mxu0 0.0
        %866 = vmatpush1.msra.mxu0 0.0
        %867 = vmatprep.subr.mxu0 0.0
        %868 = vmatpush1.msra.mxu0 0.0
        %869 = vmatprep.subr.mxu0 0.0
        %870 = vmatpush1.msra.mxu0 0.0
        %871 = vmatprep.subr.mxu0 0.0
        %872 = vmatpush1.msra.mxu0 0.0
        %873 = vmatprep.subr.mxu0 0.0
        %874 = vmatpush1.msra.mxu0 0.0
        %875 = vmatprep.subr.mxu0 0.0
        %876 = vmatpush1.msra.mxu0 0.0
        %877 = vmatprep.subr.mxu0 0.0
        %878 = vmatpush1.msra.mxu0 0.0
        %879 = vmatprep.subr.mxu0 0.0
        %880 = vmatpush1.msra.mxu0 0.0
        %881 = vmatprep.subr.mxu0 0.0
        %882 = vmatpush1.msra.mxu0 0.0
        %883 = vmatprep.subr.mxu0 0.0
        %884 = vmatpush1.msra.mxu0 0.0
        %885 = vmatprep.mubr.f32.mxu0 0.0
        %886 = vmatmul.mubr.f32.gmra.mrb[0].mxu0 %v819
        %v887 = vpop.f32.mrb[0].mxu0
        %v888 = vadd.f32 0.0, %v887
        %v889 = vpop.f32.mrb[0].mxu0
        %890 = vdwg.mxu0
        %v892 = vsel %vm402, %v562, 0
        %894 = vmatprep.subr.mxu0 0.0
        %895 = vmatpush1.msra.mxu0 %v565
        %896 = vmatprep.subr.mxu0 0.0
        %897 = vmatpush1.msra.mxu0 0.0
        %898 = vmatprep.subr.mxu0 0.0
        %899 = vmatpush1.msra.mxu0 0.0
        %900 = vmatprep.subr.mxu0 0.0
        %901 = vmatpush1.msra.mxu0 0.0
        %902 = vmatprep.subr.mxu0 0.0
        %903 = vmatpush1.msra.mxu0 0.0
        %904 = vmatprep.subr.mxu0 0.0
        %905 = vmatpush1.msra.mxu0 0.0
        %906 = vmatprep.subr.mxu0 0.0
        %907 = vmatpush1.msra.mxu0 0.0
        %908 = vmatprep.subr.mxu0 0.0
        %909 = vmatpush1.msra.mxu0 0.0
        %910 = vmatprep.subr.mxu0 0.0
        %911 = vmatpush1.msra.mxu0 0.0
        %912 = vmatprep.subr.mxu0 0.0
        %913 = vmatpush1.msra.mxu0 0.0
        %914 = vmatprep.subr.mxu0 0.0
        %915 = vmatpush1.msra.mxu0 0.0
        %916 = vmatprep.subr.mxu0 0.0
        %917 = vmatpush1.msra.mxu0 0.0
        %918 = vmatprep.subr.mxu0 0.0
        %919 = vmatpush1.msra.mxu0 0.0
        %920 = vmatprep.subr.mxu0 0.0
        %921 = vmatpush1.msra.mxu0 0.0
        %922 = vmatprep.subr.mxu0 0.0
        %923 = vmatpush1.msra.mxu0 0.0
        %924 = vmatprep.subr.mxu0 0.0
        %925 = vmatpush1.msra.mxu0 0.0
        %926 = vmatprep.subr.mxu0 0.0
        %927 = vmatpush1.msra.mxu0 0.0
        %928 = vmatprep.subr.mxu0 0.0
        %929 = vmatpush1.msra.mxu0 0.0
        %930 = vmatprep.subr.mxu0 0.0
        %931 = vmatpush1.msra.mxu0 0.0
        %932 = vmatprep.subr.mxu0 0.0
        %933 = vmatpush1.msra.mxu0 0.0
        %934 = vmatprep.subr.mxu0 0.0
        %935 = vmatpush1.msra.mxu0 0.0
        %936 = vmatprep.subr.mxu0 0.0
        %937 = vmatpush1.msra.mxu0 0.0
        %938 = vmatprep.subr.mxu0 0.0
        %939 = vmatpush1.msra.mxu0 0.0
        %940 = vmatprep.subr.mxu0 0.0
        %941 = vmatpush1.msra.mxu0 0.0
        %942 = vmatprep.subr.mxu0 0.0
        %943 = vmatpush1.msra.mxu0 0.0
        %944 = vmatprep.subr.mxu0 0.0
        %945 = vmatpush1.msra.mxu0 0.0
        %946 = vmatprep.subr.mxu0 0.0
        %947 = vmatpush1.msra.mxu0 0.0
        %948 = vmatprep.subr.mxu0 0.0
        %949 = vmatpush1.msra.mxu0 0.0
        %950 = vmatprep.subr.mxu0 0.0
        %951 = vmatpush1.msra.mxu0 0.0
        %952 = vmatprep.subr.mxu0 0.0
        %953 = vmatpush1.msra.mxu0 0.0
        %954 = vmatprep.subr.mxu0 0.0
        %955 = vmatpush1.msra.mxu0 0.0
        %956 = vmatprep.subr.mxu0 0.0
        %957 = vmatpush1.msra.mxu0 0.0
        %958 = vmatprep.mubr.f32.mxu0 0.0
        %959 = vmatmul.mubr.f32.gmra.mrb[0].mxu0 %v892
        %v960 = vpop.f32.mrb[0].mxu0
        %v961 = vadd.f32 %v888, %v960
        %v962 = vpop.f32.mrb[0].mxu0
        %963 = vdwg.mxu0
        %v964 = vadd.f32 %v566, %v739
        %s965 = scalar_lea.vmem %s1, 64
        %v966 = vld [vmem:[%s965] sm:$0xff]
        %v967 = vld [vmem:[%s965 + $0x8] sm:$0xff]
        %v968 = vld [vmem:[%s965 + $0x10] sm:$0xff]
        %v969 = vld [vmem:[%s965 + $0x18] sm:$0xff]
        %s970 = scalar_lea.vmem %s2, 2
        %v971 = vld [vmem:[%s970] sm:$0x1]
        %v973 = vlaneseq
        %v974 = vshrl.u32 %v973, 7
        %v975 = vsub.s32 0, %v974
        %v976 = vrot.slane %v971, %v975
        %978 = vmatprep.subr.mxu0 0.0
        %979 = vmatpush1.msra.mxu0 %v966
        %980 = vmatprep.subr.mxu0 0.0
        %981 = vmatpush1.msra.mxu0 %v967
        %982 = vmatprep.subr.mxu0 0.0
        %983 = vmatpush1.msra.mxu0 %v968
        %984 = vmatprep.subr.mxu0 0.0
        %985 = vmatpush1.msra.mxu0 %v969
        %986 = vmatprep.subr.mxu0 0.0
        %987 = vmatpush1.msra.mxu0 0.0
        %988 = vmatprep.subr.mxu0 0.0
        %989 = vmatpush1.msra.mxu0 0.0
        %990 = vmatprep.subr.mxu0 0.0
        %991 = vmatpush1.msra.mxu0 0.0
        %992 = vmatprep.subr.mxu0 0.0
        %993 = vmatpush1.msra.mxu0 0.0
        %994 = vmatprep.subr.mxu0 0.0
        %995 = vmatpush1.msra.mxu0 0.0
        %996 = vmatprep.subr.mxu0 0.0
        %997 = vmatpush1.msra.mxu0 0.0
        %998 = vmatprep.subr.mxu0 0.0
        %999 = vmatpush1.msra.mxu0 0.0
        %1000 = vmatprep.subr.mxu0 0.0
        %1001 = vmatpush1.msra.mxu0 0.0
        %1002 = vmatprep.subr.mxu0 0.0
        %1003 = vmatpush1.msra.mxu0 0.0
        %1004 = vmatprep.subr.mxu0 0.0
        %1005 = vmatpush1.msra.mxu0 0.0
        %1006 = vmatprep.subr.mxu0 0.0
        %1007 = vmatpush1.msra.mxu0 0.0
        %1008 = vmatprep.subr.mxu0 0.0
        %1009 = vmatpush1.msra.mxu0 0.0
        %1010 = vmatprep.subr.mxu0 0.0
        %1011 = vmatpush1.msra.mxu0 0.0
        %1012 = vmatprep.subr.mxu0 0.0
        %1013 = vmatpush1.msra.mxu0 0.0
        %1014 = vmatprep.subr.mxu0 0.0
        %1015 = vmatpush1.msra.mxu0 0.0
        %1016 = vmatprep.subr.mxu0 0.0
        %1017 = vmatpush1.msra.mxu0 0.0
        %1018 = vmatprep.subr.mxu0 0.0
        %1019 = vmatpush1.msra.mxu0 0.0
        %1020 = vmatprep.subr.mxu0 0.0
        %1021 = vmatpush1.msra.mxu0 0.0
        %1022 = vmatprep.subr.mxu0 0.0
        %1023 = vmatpush1.msra.mxu0 0.0
        %1024 = vmatprep.subr.mxu0 0.0
        %1025 = vmatpush1.msra.mxu0 0.0
        %1026 = vmatprep.subr.mxu0 0.0
        %1027 = vmatpush1.msra.mxu0 0.0
        %1028 = vmatprep.subr.mxu0 0.0
        %1029 = vmatpush1.msra.mxu0 0.0
        %1030 = vmatprep.subr.mxu0 0.0
        %1031 = vmatpush1.msra.mxu0 0.0
        %1032 = vmatprep.subr.mxu0 0.0
        %1033 = vmatpush1.msra.mxu0 0.0
        %1034 = vmatprep.subr.mxu0 0.0
        %1035 = vmatpush1.msra.mxu0 0.0
        %1036 = vmatprep.subr.mxu0 0.0
        %1037 = vmatpush1.msra.mxu0 0.0
        %1038 = vmatprep.subr.mxu0 0.0
        %1039 = vmatpush1.msra.mxu0 0.0
        %1040 = vmatprep.subr.mxu0 0.0
        %1041 = vmatpush1.msra.mxu0 0.0
        %1042 = vmatprep.mubr.f32.mxu0 0.0
        %1043 = vmatmul.mubr.f32.gmra.mrb[0].mxu0 %v326
        %v1044 = vpop.f32.mrb[0].mxu0
        %v1045 = vadd.f32 %v976, %v1044
        %v1046 = vpop.f32.mrb[0].mxu0
        %1047 = vdwg.mxu0
        %v1048 = vmul.f32 %v1045, 0.35355338
        %1050 = vrot.lane.b32.xlu0 %v1045, 120
        %v1051 = vpop.permute.xlu0 %1050
        %v1053 = vsel %vm402, %v1048, 0
        %v1055 = vsel %vm402, %v1051, 0
        %1057 = vmatprep.subr.mxu0 0.0
        %1058 = vmatpush1.xpose.msra.mxu0 %v1055
        %1059 = vmatprep.subr.mxu0 0.0
        %1060 = vmatpush1.xpose.msra.mxu0 0.0
        %1061 = vmatprep.subr.mxu0 0.0
        %1062 = vmatpush1.xpose.msra.mxu0 0.0
        %1063 = vmatprep.subr.mxu0 0.0
        %1064 = vmatpush1.xpose.msra.mxu0 0.0
        %1065 = vmatprep.subr.mxu0 0.0
        %1066 = vmatpush1.xpose.msra.mxu0 0.0
        %1067 = vmatprep.subr.mxu0 0.0
        %1068 = vmatpush1.xpose.msra.mxu0 0.0
        %1069 = vmatprep.subr.mxu0 0.0
        %1070 = vmatpush1.xpose.msra.mxu0 0.0
        %1071 = vmatprep.subr.mxu0 0.0
        %1072 = vmatpush1.xpose.msra.mxu0 0.0
        %1073 = vmatprep.subr.mxu0 0.0
        %1074 = vmatpush1.xpose.msra.mxu0 0.0
        %1075 = vmatprep.subr.mxu0 0.0
        %1076 = vmatpush1.xpose.msra.mxu0 0.0
        %1077 = vmatprep.subr.mxu0 0.0
        %1078 = vmatpush1.xpose.msra.mxu0 0.0
        %1079 = vmatprep.subr.mxu0 0.0
        %1080 = vmatpush1.xpose.msra.mxu0 0.0
        %1081 = vmatprep.subr.mxu0 0.0
        %1082 = vmatpush1.xpose.msra.mxu0 0.0
        %1083 = vmatprep.subr.mxu0 0.0
        %1084 = vmatpush1.xpose.msra.mxu0 0.0
        %1085 = vmatprep.subr.mxu0 0.0
        %1086 = vmatpush1.xpose.msra.mxu0 0.0
        %1087 = vmatprep.subr.mxu0 0.0
        %1088 = vmatpush1.xpose.msra.mxu0 0.0
        %1089 = vmatprep.subr.mxu0 0.0
        %1090 = vmatpush1.xpose.msra.mxu0 0.0
        %1091 = vmatprep.subr.mxu0 0.0
        %1092 = vmatpush1.xpose.msra.mxu0 0.0
        %1093 = vmatprep.subr.mxu0 0.0
        %1094 = vmatpush1.xpose.msra.mxu0 0.0
        %1095 = vmatprep.subr.mxu0 0.0
        %1096 = vmatpush1.xpose.msra.mxu0 0.0
        %1097 = vmatprep.subr.mxu0 0.0
        %1098 = vmatpush1.xpose.msra.mxu0 0.0
        %1099 = vmatprep.subr.mxu0 0.0
        %1100 = vmatpush1.xpose.msra.mxu0 0.0
        %1101 = vmatprep.subr.mxu0 0.0
        %1102 = vmatpush1.xpose.msra.mxu0 0.0
        %1103 = vmatprep.subr.mxu0 0.0
        %1104 = vmatpush1.xpose.msra.mxu0 0.0
        %1105 = vmatprep.subr.mxu0 0.0
        %1106 = vmatpush1.xpose.msra.mxu0 0.0
        %1107 = vmatprep.subr.mxu0 0.0
        %1108 = vmatpush1.xpose.msra.mxu0 0.0
        %1109 = vmatprep.subr.mxu0 0.0
        %1110 = vmatpush1.xpose.msra.mxu0 0.0
        %1111 = vmatprep.subr.mxu0 0.0
        %1112 = vmatpush1.xpose.msra.mxu0 0.0
        %1113 = vmatprep.subr.mxu0 0.0
        %1114 = vmatpush1.xpose.msra.mxu0 0.0
        %1115 = vmatprep.subr.mxu0 0.0
        %1116 = vmatpush1.xpose.msra.mxu0 0.0
        %1117 = vmatprep.subr.mxu0 0.0
        %1118 = vmatpush1.xpose.msra.mxu0 0.0
        %1119 = vmatprep.subr.mxu0 0.0
        %1120 = vmatpush1.xpose.msra.mxu0 0.0
        %1121 = vmatprep.mubr.f32.mxu0 0.0
        %1122 = vmatmul.mubr.f32.gmra.mrb[0].mxu0 %v1053
        %v1123 = vpop.f32.mrb[0].mxu0
        %v1124 = vadd.f32 0.0, %v1123
        %v1125 = vpop.f32.mrb[0].mxu0
        %1126 = vdwg.mxu0
        %v1127 = vsel %vm402, %v1124, -inf
        %1128 = vmax.xlane.f32.xlu0 %v1127
        %v1129 = vpop.xlane.xlu0 %1128
        %v1130 = vsub.f32 %v1124, %v1129
        %v1131 = vmul.f32 %v1130, 1.442695
        %v1132 = vpow.pop %v1131
        %v1133 = vsel %vm402, %v1132, 0.0
        %1134 = vadd.xlane.f32.xlu0 %v1133
        %v1135 = vpop.xlane.xlu0 %1134
        %v1136 = vrcp.pop %v1135
        %v1137 = vmul.f32 %v1132, %v1136
        %1138 = vrot.lane.b32.xlu0 %v1045, 112
        %v1139 = vpop.permute.xlu0 %1138
        %v1142 = vsel %vm402, %v1137, 0
        %1144 = vmatprep.subr.mxu0 0.0
        %1145 = vmatpush1.msra.mxu0 %v1139
        %1146 = vmatprep.subr.mxu0 0.0
        %1147 = vmatpush1.msra.mxu0 0.0
        %1148 = vmatprep.subr.mxu0 0.0
        %1149 = vmatpush1.msra.mxu0 0.0
        %1150 = vmatprep.subr.mxu0 0.0
        %1151 = vmatpush1.msra.mxu0 0.0
        %1152 = vmatprep.subr.mxu0 0.0
        %1153 = vmatpush1.msra.mxu0 0.0
        %1154 = vmatprep.subr.mxu0 0.0
        %1155 = vmatpush1.msra.mxu0 0.0
        %1156 = vmatprep.subr.mxu0 0.0
        %1157 = vmatpush1.msra.mxu0 0.0
        %1158 = vmatprep.subr.mxu0 0.0
        %1159 = vmatpush1.msra.mxu0 0.0
        %1160 = vmatprep.subr.mxu0 0.0
        %1161 = vmatpush1.msra.mxu0 0.0
        %1162 = vmatprep.subr.mxu0 0.0
        %1163 = vmatpush1.msra.mxu0 0.0
        %1164 = vmatprep.subr.mxu0 0.0
        %1165 = vmatpush1.msra.mxu0 0.0
        %1166 = vmatprep.subr.mxu0 0.0
        %1167 = vmatpush1.msra.mxu0 0.0
        %1168 = vmatprep.subr.mxu0 0.0
        %1169 = vmatpush1.msra.mxu0 0.0
        %1170 = vmatprep.subr.mxu0 0.0
        %1171 = vmatpush1.msra.mxu0 0.0
        %1172 = vmatprep.subr.mxu0 0.0
        %1173 = vmatpush1.msra.mxu0 0.0
        %1174 = vmatprep.subr.mxu0 0.0
        %1175 = vmatpush1.msra.mxu0 0.0
        %1176 = vmatprep.subr.mxu0 0.0
        %1177 = vmatpush1.msra.mxu0 0.0
        %1178 = vmatprep.subr.mxu0 0.0
        %1179 = vmatpush1.msra.mxu0 0.0
        %1180 = vmatprep.subr.mxu0 0.0
        %1181 = vmatpush1.msra.mxu0 0.0
        %1182 = vmatprep.subr.mxu0 0.0
        %1183 = vmatpush1.msra.mxu0 0.0
        %1184 = vmatprep.subr.mxu0 0.0
        %1185 = vmatpush1.msra.mxu0 0.0
        %1186 = vmatprep.subr.mxu0 0.0
        %1187 = vmatpush1.msra.mxu0 0.0
        %1188 = vmatprep.subr.mxu0 0.0
        %1189 = vmatpush1.msra.mxu0 0.0
        %1190 = vmatprep.subr.mxu0 0.0
        %1191 = vmatpush1.msra.mxu0 0.0
        %1192 = vmatprep.subr.mxu0 0.0
        %1193 = vmatpush1.msra.mxu0 0.0
        %1194 = vmatprep.subr.mxu0 0.0
        %1195 = vmatpush1.msra.mxu0 0.0
        %1196 = vmatprep.subr.mxu0 0.0
        %1197 = vmatpush1.msra.mxu0 0.0
        %1198 = vmatprep.subr.mxu0 0.0
        %1199 = vmatpush1.msra.mxu0 0.0
        %1200 = vmatprep.subr.mxu0 0.0
        %1201 = vmatpush1.msra.mxu0 0.0
        %1202 = vmatprep.subr.mxu0 0.0
        %1203 = vmatpush1.msra.mxu0 0.0
        %1204 = vmatprep.subr.mxu0 0.0
        %1205 = vmatpush1.msra.mxu0 0.0
        %1206 = vmatprep.subr.mxu0 0.0
        %1207 = vmatpush1.msra.mxu0 0.0
        %1208 = vmatprep.mubr.f32.mxu0 0.0
        %1209 = vmatmul.mubr.f32.gmra.mrb[0].mxu0 %v1142
        %v1210 = vpop.f32.mrb[0].mxu0
        %v1211 = vadd.f32 0.0, %v1210
        %v1212 = vpop.f32.mrb[0].mxu0
        %1213 = vdwg.mxu0
        %s1214 = scalar_lea.vmem %s3, 16
        %v1215 = vld [vmem:[%s1214] sm:$0xff]
        %v1217 = vsel %vm402, %v1211, 0
        %1219 = vmatprep.subr.mxu0 0.0
        %1220 = vmatpush1.msra.mxu0 %v1215
        %1221 = vmatprep.subr.mxu0 0.0
        %1222 = vmatpush1.msra.mxu0 0.0
        %1223 = vmatprep.subr.mxu0 0.0
        %1224 = vmatpush1.msra.mxu0 0.0
        %1225 = vmatprep.subr.mxu0 0.0
        %1226 = vmatpush1.msra.mxu0 0.0
        %1227 = vmatprep.subr.mxu0 0.0
        %1228 = vmatpush1.msra.mxu0 0.0
        %1229 = vmatprep.subr.mxu0 0.0
        %1230 = vmatpush1.msra.mxu0 0.0
        %1231 = vmatprep.subr.mxu0 0.0
        %1232 = vmatpush1.msra.mxu0 0.0
        %1233 = vmatprep.subr.mxu0 0.0
        %1234 = vmatpush1.msra.mxu0 0.0
        %1235 = vmatprep.subr.mxu0 0.0
        %1236 = vmatpush1.msra.mxu0 0.0
        %1237 = vmatprep.subr.mxu0 0.0
        %1238 = vmatpush1.msra.mxu0 0.0
        %1239 = vmatprep.subr.mxu0 0.0
        %1240 = vmatpush1.msra.mxu0 0.0
        %1241 = vmatprep.subr.mxu0 0.0
        %1242 = vmatpush1.msra.mxu0 0.0
        %1243 = vmatprep.subr.mxu0 0.0
        %1244 = vmatpush1.msra.mxu0 0.0
        %1245 = vmatprep.subr.mxu0 0.0
        %1246 = vmatpush1.msra.mxu0 0.0
        %1247 = vmatprep.subr.mxu0 0.0
        %1248 = vmatpush1.msra.mxu0 0.0
        %1249 = vmatprep.subr.mxu0 0.0
        %1250 = vmatpush1.msra.mxu0 0.0
        %1251 = vmatprep.subr.mxu0 0.0
        %1252 = vmatpush1.msra.mxu0 0.0
        %1253 = vmatprep.subr.mxu0 0.0
        %1254 = vmatpush1.msra.mxu0 0.0
        %1255 = vmatprep.subr.mxu0 0.0
        %1256 = vmatpush1.msra.mxu0 0.0
        %1257 = vmatprep.subr.mxu0 0.0
        %1258 = vmatpush1.msra.mxu0 0.0
        %1259 = vmatprep.subr.mxu0 0.0
        %1260 = vmatpush1.msra.mxu0 0.0
        %1261 = vmatprep.subr.mxu0 0.0
        %1262 = vmatpush1.msra.mxu0 0.0
        %1263 = vmatprep.subr.mxu0 0.0
        %1264 = vmatpush1.msra.mxu0 0.0
        %1265 = vmatprep.subr.mxu0 0.0
        %1266 = vmatpush1.msra.mxu0 0.0
        %1267 = vmatprep.subr.mxu0 0.0
        %1268 = vmatpush1.msra.mxu0 0.0
        %1269 = vmatprep.subr.mxu0 0.0
        %1270 = vmatpush1.msra.mxu0 0.0
        %1271 = vmatprep.subr.mxu0 0.0
        %1272 = vmatpush1.msra.mxu0 0.0
        %1273 = vmatprep.subr.mxu0 0.0
        %1274 = vmatpush1.msra.mxu0 0.0
        %1275 = vmatprep.subr.mxu0 0.0
        %1276 = vmatpush1.msra.mxu0 0.0
        %1277 = vmatprep.subr.mxu0 0.0
        %1278 = vmatpush1.msra.mxu0 0.0
        %1279 = vmatprep.subr.mxu0 0.0
        %1280 = vmatpush1.msra.mxu0 0.0
        %1281 = vmatprep.subr.mxu0 0.0
        %1282 = vmatpush1.msra.mxu0 0.0
        %1283 = vmatprep.mubr.f32.mxu0 0.0
        %1284 = vmatmul.mubr.f32.gmra.mrb[0].mxu0 %v1217
        %v1285 = vpop.f32.mrb[0].mxu0
        %v1286 = vadd.f32 0.0, %v1285
        %v1287 = vpop.f32.mrb[0].mxu0
        %1288 = vdwg.mxu0
        %v1289 = vadd.f32 %v961, %v1286
        %v1290 = vadd.f32 %v964, %v1137
        %s1291 = scalar_lea.vmem %s1, 96
        %v1292 = vld [vmem:[%s1291] sm:$0xff]
        %v1293 = vld [vmem:[%s1291 + $0x8] sm:$0xff]
        %v1294 = vld [vmem:[%s1291 + $0x10] sm:$0xff]
        %v1295 = vld [vmem:[%s1291 + $0x18] sm:$0xff]
        %s1296 = scalar_lea.vmem %s2, 3
        %v1297 = vld [vmem:[%s1296] sm:$0x1]
        %v1299 = vlaneseq
        %v1300 = vshrl.u32 %v1299, 7
        %v1301 = vsub.s32 0, %v1300
        %v1302 = vrot.slane %v1297, %v1301
        %1304 = vmatprep.subr.mxu0 0.0
        %1305 = vmatpush1.msra.mxu0 %v1292
        %1306 = vmatprep.subr.mxu0 0.0
        %1307 = vmatpush1.msra.mxu0 %v1293
        %1308 = vmatprep.subr.mxu0 0.0
        %1309 = vmatpush1.msra.mxu0 %v1294
        %1310 = vmatprep.subr.mxu0 0.0
        %1311 = vmatpush1.msra.mxu0 %v1295
        %1312 = vmatprep.subr.mxu0 0.0
        %1313 = vmatpush1.msra.mxu0 0.0
        %1314 = vmatprep.subr.mxu0 0.0
        %1315 = vmatpush1.msra.mxu0 0.0
        %1316 = vmatprep.subr.mxu0 0.0
        %1317 = vmatpush1.msra.mxu0 0.0
        %1318 = vmatprep.subr.mxu0 0.0
        %1319 = vmatpush1.msra.mxu0 0.0
        %1320 = vmatprep.subr.mxu0 0.0
        %1321 = vmatpush1.msra.mxu0 0.0
        %1322 = vmatprep.subr.mxu0 0.0
        %1323 = vmatpush1.msra.mxu0 0.0
        %1324 = vmatprep.subr.mxu0 0.0
        %1325 = vmatpush1.msra.mxu0 0.0
        %1326 = vmatprep.subr.mxu0 0.0
        %1327 = vmatpush1.msra.mxu0 0.0
        %1328 = vmatprep.subr.mxu0 0.0
        %1329 = vmatpush1.msra.mxu0 0.0
        %1330 = vmatprep.subr.mxu0 0.0
        %1331 = vmatpush1.msra.mxu0 0.0
        %1332 = vmatprep.subr.mxu0 0.0
        %1333 = vmatpush1.msra.mxu0 0.0
        %1334 = vmatprep.subr.mxu0 0.0
        %1335 = vmatpush1.msra.mxu0 0.0
        %1336 = vmatprep.subr.mxu0 0.0
        %1337 = vmatpush1.msra.mxu0 0.0
        %1338 = vmatprep.subr.mxu0 0.0
        %1339 = vmatpush1.msra.mxu0 0.0
        %1340 = vmatprep.subr.mxu0 0.0
        %1341 = vmatpush1.msra.mxu0 0.0
        %1342 = vmatprep.subr.mxu0 0.0
        %1343 = vmatpush1.msra.mxu0 0.0
        %1344 = vmatprep.subr.mxu0 0.0
        %1345 = vmatpush1.msra.mxu0 0.0
        %1346 = vmatprep.subr.mxu0 0.0
        %1347 = vmatpush1.msra.mxu0 0.0
        %1348 = vmatprep.subr.mxu0 0.0
        %1349 = vmatpush1.msra.mxu0 0.0
        %1350 = vmatprep.subr.mxu0 0.0
        %1351 = vmatpush1.msra.mxu0 0.0
        %1352 = vmatprep.subr.mxu0 0.0
        %1353 = vmatpush1.msra.mxu0 0.0
        %1354 = vmatprep.subr.mxu0 0.0
        %1355 = vmatpush1.msra.mxu0 0.0
        %1356 = vmatprep.subr.mxu0 0.0
        %1357 = vmatpush1.msra.mxu0 0.0
        %1358 = vmatprep.subr.mxu0 0.0
        %1359 = vmatpush1.msra.mxu0 0.0
        %1360 = vmatprep.subr.mxu0 0.0
        %1361 = vmatpush1.msra.mxu0 0.0
        %1362 = vmatprep.subr.mxu0 0.0
        %1363 = vmatpush1.msra.mxu0 0.0
        %1364 = vmatprep.subr.mxu0 0.0
        %1365 = vmatpush1.msra.mxu0 0.0
        %1366 = vmatprep.subr.mxu0 0.0
        %1367 = vmatpush1.msra.mxu0 0.0
        %1368 = vmatprep.mubr.f32.mxu0 0.0
        %1369 = vmatmul.mubr.f32.gmra.mrb[0].mxu0 %v326
        %v1370 = vpop.f32.mrb[0].mxu0
        %v1371 = vadd.f32 %v1302, %v1370
        %v1372 = vpop.f32.mrb[0].mxu0
        %1373 = vdwg.mxu0
        %v1374 = vmul.f32 %v1371, 0.35355338
        %1376 = vrot.lane.b32.xlu0 %v1371, 120
        %v1377 = vpop.permute.xlu0 %1376
        %v1379 = vsel %vm402, %v1374, 0
        %v1381 = vsel %vm402, %v1377, 0
        %1383 = vmatprep.subr.mxu0 0.0
        %1384 = vmatpush1.xpose.msra.mxu0 %v1381
        %1385 = vmatprep.subr.mxu0 0.0
        %1386 = vmatpush1.xpose.msra.mxu0 0.0
        %1387 = vmatprep.subr.mxu0 0.0
        %1388 = vmatpush1.xpose.msra.mxu0 0.0
        %1389 = vmatprep.subr.mxu0 0.0
        %1390 = vmatpush1.xpose.msra.mxu0 0.0
        %1391 = vmatprep.subr.mxu0 0.0
        %1392 = vmatpush1.xpose.msra.mxu0 0.0
        %1393 = vmatprep.subr.mxu0 0.0
        %1394 = vmatpush1.xpose.msra.mxu0 0.0
        %1395 = vmatprep.subr.mxu0 0.0
        %1396 = vmatpush1.xpose.msra.mxu0 0.0
        %1397 = vmatprep.subr.mxu0 0.0
        %1398 = vmatpush1.xpose.msra.mxu0 0.0
        %1399 = vmatprep.subr.mxu0 0.0
        %1400 = vmatpush1.xpose.msra.mxu0 0.0
        %1401 = vmatprep.subr.mxu0 0.0
        %1402 = vmatpush1.xpose.msra.mxu0 0.0
        %1403 = vmatprep.subr.mxu0 0.0
        %1404 = vmatpush1.xpose.msra.mxu0 0.0
        %1405 = vmatprep.subr.mxu0 0.0
        %1406 = vmatpush1.xpose.msra.mxu0 0.0
        %1407 = vmatprep.subr.mxu0 0.0
        %1408 = vmatpush1.xpose.msra.mxu0 0.0
        %1409 = vmatprep.subr.mxu0 0.0
        %1410 = vmatpush1.xpose.msra.mxu0 0.0
        %1411 = vmatprep.subr.mxu0 0.0
        %1412 = vmatpush1.xpose.msra.mxu0 0.0
        %1413 = vmatprep.subr.mxu0 0.0
        %1414 = vmatpush1.xpose.msra.mxu0 0.0
        %1415 = vmatprep.subr.mxu0 0.0
        %1416 = vmatpush1.xpose.msra.mxu0 0.0
        %1417 = vmatprep.subr.mxu0 0.0
        %1418 = vmatpush1.xpose.msra.mxu0 0.0
        %1419 = vmatprep.subr.mxu0 0.0
        %1420 = vmatpush1.xpose.msra.mxu0 0.0
        %1421 = vmatprep.subr.mxu0 0.0
        %1422 = vmatpush1.xpose.msra.mxu0 0.0
        %1423 = vmatprep.subr.mxu0 0.0
        %1424 = vmatpush1.xpose.msra.mxu0 0.0
        %1425 = vmatprep.subr.mxu0 0.0
        %1426 = vmatpush1.xpose.msra.mxu0 0.0
        %1427 = vmatprep.subr.mxu0 0.0
        %1428 = vmatpush1.xpose.msra.mxu0 0.0
        %1429 = vmatprep.subr.mxu0 0.0
        %1430 = vmatpush1.xpose.msra.mxu0 0.0
        %1431 = vmatprep.subr.mxu0 0.0
        %1432 = vmatpush1.xpose.msra.mxu0 0.0
        %1433 = vmatprep.subr.mxu0 0.0
        %1434 = vmatpush1.xpose.msra.mxu0 0.0
        %1435 = vmatprep.subr.mxu0 0.0
        %1436 = vmatpush1.xpose.msra.mxu0 0.0
        %1437 = vmatprep.subr.mxu0 0.0
        %1438 = vmatpush1.xpose.msra.mxu0 0.0
        %1439 = vmatprep.subr.mxu0 0.0
        %1440 = vmatpush1.xpose.msra.mxu0 0.0
        %1441 = vmatprep.subr.mxu0 0.0
        %1442 = vmatpush1.xpose.msra.mxu0 0.0
        %1443 = vmatprep.subr.mxu0 0.0
        %1444 = vmatpush1.xpose.msra.mxu0 0.0
        %1445 = vmatprep.subr.mxu0 0.0
        %1446 = vmatpush1.xpose.msra.mxu0 0.0
        %1447 = vmatprep.mubr.f32.mxu0 0.0
        %1448 = vmatmul.mubr.f32.gmra.mrb[0].mxu0 %v1379
        %v1449 = vpop.f32.mrb[0].mxu0
        %v1450 = vadd.f32 0.0, %v1449
        %v1451 = vpop.f32.mrb[0].mxu0
        %1452 = vdwg.mxu0
        %v1453 = vsel %vm402, %v1450, -inf
        %1454 = vmax.xlane.f32.xlu0 %v1453
        %v1455 = vpop.xlane.xlu0 %1454
        %v1456 = vsub.f32 %v1450, %v1455
        %v1457 = vmul.f32 %v1456, 1.442695
        %v1458 = vpow.pop %v1457
        %v1459 = vsel %vm402, %v1458, 0.0
        %1460 = vadd.xlane.f32.xlu0 %v1459
        %v1461 = vpop.xlane.xlu0 %1460
        %v1462 = vrcp.pop %v1461
        %v1463 = vmul.f32 %v1458, %v1462
        %1464 = vrot.lane.b32.xlu0 %v1371, 112
        %v1465 = vpop.permute.xlu0 %1464
        %v1468 = vsel %vm402, %v1463, 0
        %1470 = vmatprep.subr.mxu0 0.0
        %1471 = vmatpush1.msra.mxu0 %v1465
        %1472 = vmatprep.subr.mxu0 0.0
        %1473 = vmatpush1.msra.mxu0 0.0
        %1474 = vmatprep.subr.mxu0 0.0
        %1475 = vmatpush1.msra.mxu0 0.0
        %1476 = vmatprep.subr.mxu0 0.0
        %1477 = vmatpush1.msra.mxu0 0.0
        %1478 = vmatprep.subr.mxu0 0.0
        %1479 = vmatpush1.msra.mxu0 0.0
        %1480 = vmatprep.subr.mxu0 0.0
        %1481 = vmatpush1.msra.mxu0 0.0
        %1482 = vmatprep.subr.mxu0 0.0
        %1483 = vmatpush1.msra.mxu0 0.0
        %1484 = vmatprep.subr.mxu0 0.0
        %1485 = vmatpush1.msra.mxu0 0.0
        %1486 = vmatprep.subr.mxu0 0.0
        %1487 = vmatpush1.msra.mxu0 0.0
        %1488 = vmatprep.subr.mxu0 0.0
        %1489 = vmatpush1.msra.mxu0 0.0
        %1490 = vmatprep.subr.mxu0 0.0
        %1491 = vmatpush1.msra.mxu0 0.0
        %1492 = vmatprep.subr.mxu0 0.0
        %1493 = vmatpush1.msra.mxu0 0.0
        %1494 = vmatprep.subr.mxu0 0.0
        %1495 = vmatpush1.msra.mxu0 0.0
        %1496 = vmatprep.subr.mxu0 0.0
        %1497 = vmatpush1.msra.mxu0 0.0
        %1498 = vmatprep.subr.mxu0 0.0
        %1499 = vmatpush1.msra.mxu0 0.0
        %1500 = vmatprep.subr.mxu0 0.0
        %1501 = vmatpush1.msra.mxu0 0.0
        %1502 = vmatprep.subr.mxu0 0.0
        %1503 = vmatpush1.msra.mxu0 0.0
        %1504 = vmatprep.subr.mxu0 0.0
        %1505 = vmatpush1.msra.mxu0 0.0
        %1506 = vmatprep.subr.mxu0 0.0
        %1507 = vmatpush1.msra.mxu0 0.0
        %1508 = vmatprep.subr.mxu0 0.0
        %1509 = vmatpush1.msra.mxu0 0.0
        %1510 = vmatprep.subr.mxu0 0.0
        %1511 = vmatpush1.msra.mxu0 0.0
        %1512 = vmatprep.subr.mxu0 0.0
        %1513 = vmatpush1.msra.mxu0 0.0
        %1514 = vmatprep.subr.mxu0 0.0
        %1515 = vmatpush1.msra.mxu0 0.0
        %1516 = vmatprep.subr.mxu0 0.0
        %1517 = vmatpush1.msra.mxu0 0.0
        %1518 = vmatprep.subr.mxu0 0.0
        %1519 = vmatpush1.msra.mxu0 0.0
        %1520 = vmatprep.subr.mxu0 0.0
        %1521 = vmatpush1.msra.mxu0 0.0
        %1522 = vmatprep.subr.mxu0 0.0
        %1523 = vmatpush1.msra.mxu0 0.0
        %1524 = vmatprep.subr.mxu0 0.0
        %1525 = vmatpush1.msra.mxu0 0.0
        %1526 = vmatprep.subr.mxu0 0.0
        %1527 = vmatpush1.msra.mxu0 0.0
        %1528 = vmatprep.subr.mxu0 0.0
        %1529 = vmatpush1.msra.mxu0 0.0
        %1530 = vmatprep.subr.mxu0 0.0
        %1531 = vmatpush1.msra.mxu0 0.0
        %1532 = vmatprep.subr.mxu0 0.0
        %1533 = vmatpush1.msra.mxu0 0.0
        %1534 = vmatprep.mubr.f32.mxu0 0.0
        %1535 = vmatmul.mubr.f32.gmra.mrb[0].mxu0 %v1468
        %v1536 = vpop.f32.mrb[0].mxu0
        %v1537 = vadd.f32 0.0, %v1536
        %v1538 = vpop.f32.mrb[0].mxu0
        %1539 = vdwg.mxu0
        %s1540 = scalar_lea.vmem %s3, 24
        %v1541 = vld [vmem:[%s1540] sm:$0xff]
        %v1543 = vsel %vm402, %v1537, 0
        %1545 = vmatprep.subr.mxu0 0.0
        %1546 = vmatpush1.msra.mxu0 %v1541
        %1547 = vmatprep.subr.mxu0 0.0
        %1548 = vmatpush1.msra.mxu0 0.0
        %1549 = vmatprep.subr.mxu0 0.0
        %1550 = vmatpush1.msra.mxu0 0.0
        %1551 = vmatprep.subr.mxu0 0.0
        %1552 = vmatpush1.msra.mxu0 0.0
        %1553 = vmatprep.subr.mxu0 0.0
        %1554 = vmatpush1.msra.mxu0 0.0
        %1555 = vmatprep.subr.mxu0 0.0
        %1556 = vmatpush1.msra.mxu0 0.0
        %1557 = vmatprep.subr.mxu0 0.0
        %1558 = vmatpush1.msra.mxu0 0.0
        %1559 = vmatprep.subr.mxu0 0.0
        %1560 = vmatpush1.msra.mxu0 0.0
        %1561 = vmatprep.subr.mxu0 0.0
        %1562 = vmatpush1.msra.mxu0 0.0
        %1563 = vmatprep.subr.mxu0 0.0
        %1564 = vmatpush1.msra.mxu0 0.0
        %1565 = vmatprep.subr.mxu0 0.0
        %1566 = vmatpush1.msra.mxu0 0.0
        %1567 = vmatprep.subr.mxu0 0.0
        %1568 = vmatpush1.msra.mxu0 0.0
        %1569 = vmatprep.subr.mxu0 0.0
        %1570 = vmatpush1.msra.mxu0 0.0
        %1571 = vmatprep.subr.mxu0 0.0
        %1572 = vmatpush1.msra.mxu0 0.0
        %1573 = vmatprep.subr.mxu0 0.0
        %1574 = vmatpush1.msra.mxu0 0.0
        %1575 = vmatprep.subr.mxu0 0.0
        %1576 = vmatpush1.msra.mxu0 0.0
        %1577 = vmatprep.subr.mxu0 0.0
        %1578 = vmatpush1.msra.mxu0 0.0
        %1579 = vmatprep.subr.mxu0 0.0
        %1580 = vmatpush1.msra.mxu0 0.0
        %1581 = vmatprep.subr.mxu0 0.0
        %1582 = vmatpush1.msra.mxu0 0.0
        %1583 = vmatprep.subr.mxu0 0.0
        %1584 = vmatpush1.msra.mxu0 0.0
        %1585 = vmatprep.subr.mxu0 0.0
        %1586 = vmatpush1.msra.mxu0 0.0
        %1587 = vmatprep.subr.mxu0 0.0
        %1588 = vmatpush1.msra.mxu0 0.0
        %1589 = vmatprep.subr.mxu0 0.0
        %1590 = vmatpush1.msra.mxu0 0.0
        %1591 = vmatprep.subr.mxu0 0.0
        %1592 = vmatpush1.msra.mxu0 0.0
        %1593 = vmatprep.subr.mxu0 0.0
        %1594 = vmatpush1.msra.mxu0 0.0
        %1595 = vmatprep.subr.mxu0 0.0
        %1596 = vmatpush1.msra.mxu0 0.0
        %1597 = vmatprep.subr.mxu0 0.0
        %1598 = vmatpush1.msra.mxu0 0.0
        %1599 = vmatprep.subr.mxu0 0.0
        %1600 = vmatpush1.msra.mxu0 0.0
        %1601 = vmatprep.subr.mxu0 0.0
        %1602 = vmatpush1.msra.mxu0 0.0
        %1603 = vmatprep.subr.mxu0 0.0
        %1604 = vmatpush1.msra.mxu0 0.0
        %1605 = vmatprep.subr.mxu0 0.0
        %1606 = vmatpush1.msra.mxu0 0.0
        %1607 = vmatprep.subr.mxu0 0.0
        %1608 = vmatpush1.msra.mxu0 0.0
        %1609 = vmatprep.mubr.f32.mxu0 0.0
        %1610 = vmatmul.mubr.f32.gmra.mrb[0].mxu0 %v1543
        %v1611 = vpop.f32.mrb[0].mxu0
        %v1612 = vadd.f32 0.0, %v1611
        %v1613 = vpop.f32.mrb[0].mxu0
        %1614 = vdwg.mxu0
        %v1615 = vadd.f32 %v1289, %v1612
        %v1616 = vadd.f32 %v1290, %v1463
        %v1617 = vadd.f32 %v312, %v1615
        %v1618 = vld [vmem:[%s4] sm:$0x1]
        %v1620 = vlaneseq
        %v1621 = vshrl.u32 %v1620, 7
        %v1622 = vsub.s32 0, %v1621
        %v1623 = vrot.slane %v1618, %v1622
        %v1625 = vadd.f32 %v1617, %v1623
        %v1626 = vsel %vm324, %v1625, 0.0
        %1627 = vadd.xlane.f32.xlu0 %v1626
        %v1628 = vpop.xlane.xlu0 %1627
        %v1629 = vrcp.pop 32.0
        %v1630 = vmul.f32 %v1628, %v1629
        %v1631 = vsub.f32 %v1625, %v1630
        %v1632 = vmul.f32 %v1631, %v1631
        %v1633 = vsel %vm324, %v1632, 0.0
        %1634 = vadd.xlane.f32.xlu0 %v1633
        %v1635 = vpop.xlane.xlu0 %1634
        %v1636 = vmul.f32 %v1635, %v1629
        %v1637 = vadd.f32 %v1636, 1e-05
        %v1638 = vrsqrt.pop %v1637
        %v1639 = vmul.f32 %v1631, %v1638
        %v1640 = vld [vmem:[%s5] sm:$0x1]
        %v1642 = vlaneseq
        %v1643 = vshrl.u32 %v1642, 7
        %v1644 = vsub.s32 0, %v1643
        %v1645 = vrot.slane %v1640, %v1644
        %v1647 = vmul.f32 %v1639, %v1645
        %v1648 = vld [vmem:[%s6] sm:$0x1]
        %v1650 = vlaneseq
        %v1651 = vshrl.u32 %v1650, 7
        %v1652 = vsub.s32 0, %v1651
        %v1653 = vrot.slane %v1648, %v1652
        %v1655 = vadd.f32 %v1647, %v1653
        %1656 = vst.msk [vmem:[%s300] sm:$0xff] %vm324, %v1655
        %v1657 = vmul.f32 %v1616, 0.25
        %1658 = vst.msk [vmem:[%s307] sm:$0xff] %vm402, %v1657
        %s1659 = sand.u32 %s186, 1
        %s1660 = scalar_lea.sflag [#allocation3], %s1659
        %s1661 = sand.u32 %s186, 1
        %s1662 = smul.addr %s1661, 8
        %s1663 = scalar_lea.vmem [#allocation2], %s1662
        %s1664 = sand.u32 %s212, 1
        %s1665 = scalar_lea.sflag [#allocation5], %s1664
        %s1666 = sand.u32 %s212, 1
        %s1667 = smul.addr %s1666, 8
        %s1668 = scalar_lea.vmem [#allocation4], %s1667
        // Predicated region
        $region49: #{tpu_custom_call.1} parent=47 // pred_check
          %p1669 = pneg %p196
        $region50: #{tpu_custom_call.1} parent=47 // pred_check_branch
          %1671 = sbr.rel (%p1669) target = $region52
        $region51: #{tpu_custom_call.1} parent=47 // pred_region
          %s1673 = ssub.s32 128, 128
          %1674 = vsyncadd %s1660, %s1673
          %s1675 = smul.addr %s26, 128
          %s1676 = scalar_lea.hbm %s7, %s1675
          %s1678 = sshll.u32 %s1663, 4
          %s1679 = int_to_ptr.vmem [resolvable:$true] %s1678
          %1681 = dma.vmem_to_hbm [thread:$0]  %s1679, 128, %s1676, %s1660
        $region52: #{tpu_custom_call.1} parent=47 // pred_fallthru
          _
        // Predicated region
        $region53: #{tpu_custom_call.1} parent=47 // pred_check
          %p1682 = pneg %p222
        $region54: #{tpu_custom_call.1} parent=47 // pred_check_branch
          %1684 = sbr.rel (%p1682) target = $region56
        $region55: #{tpu_custom_call.1} parent=47 // pred_region
          %s1686 = ssub.s32 128, 128
          %1687 = vsyncadd %s1665, %s1686
          %s1688 = smul.addr %s26, 128
          %s1689 = scalar_lea.hbm %s8, %s1688
          %s1691 = sshll.u32 %s1668, 4
          %s1692 = int_to_ptr.vmem [resolvable:$true] %s1691
          %1694 = dma.vmem_to_hbm [thread:$0]  %s1692, 128, %s1689, %s1665
        $region56: #{tpu_custom_call.1} parent=47 // pred_fallthru
          _
      $region48: #{tpu_custom_call.1} parent=5 // pred_fallthru
        _
      %p1695 = scmp.le.s32.totalorder 2, %s21
      // Predicated region
      $region57: #{tpu_custom_call.1} parent=5 // pred_check
        %p1696 = pneg %p1695
      $region58: #{tpu_custom_call.1} parent=5 // pred_check_branch
        %1698 = sbr.rel (%p1696) target = $region60
      $region59: #{tpu_custom_call.1} parent=5 // pred_region
        %s1699 = ssub.s32 %s21, 2
        // Predicated region
        $region61: #{tpu_custom_call.1} parent=59 // pred_check
          %p1700 = pneg %p202
        $region62: #{tpu_custom_call.1} parent=59 // pred_check_branch
          %1702 = sbr.rel (%p1700) target = $region64
        $region63: #{tpu_custom_call.1} parent=59 // pred_region
          %s1703 = sand.u32 %s187, 1
          %s1704 = scalar_lea.sflag [#allocation3], %s1703
          %s1705 = sand.u32 %s187, 1
          %s1706 = smul.addr %s1705, 8
          %s1707 = scalar_lea.vmem [#allocation2], %s1706
          %1708 = dma.done %s1704, 128
        $region64: #{tpu_custom_call.1} parent=59 // pred_fallthru
          _
        // Predicated region
        $region65: #{tpu_custom_call.1} parent=59 // pred_check
          %p1709 = pneg %p228
        $region66: #{tpu_custom_call.1} parent=59 // pred_check_branch
          %1711 = sbr.rel (%p1709) target = $region68
        $region67: #{tpu_custom_call.1} parent=59 // pred_region
          %s1712 = sand.u32 %s213, 1
          %s1713 = scalar_lea.sflag [#allocation5], %s1712
          %s1714 = sand.u32 %s213, 1
          %s1715 = smul.addr %s1714, 8
          %s1716 = scalar_lea.vmem [#allocation4], %s1715
          %1717 = dma.done %s1713, 128
        $region68: #{tpu_custom_call.1} parent=59 // pred_fallthru
          _
      $region60: #{tpu_custom_call.1} parent=5 // pred_fallthru
        _
    $region6: #{tpu_custom_call.1} parent=1 // loop_footer
      %s25 = sadd.s32 1, %s21
    $region7: #{tpu_custom_call.1} parent=1 // loop_footer_branch
      %20 = sbr.rel target = $region3
    $region8: #{tpu_custom_call.1} parent=1 // loop_exit
      _
    %1718 = vsyncpa [#allocation3], 1
    %s1719 = scalar_lea.sflag [#allocation3], 1
    %1720 = vsyncpa %s1719, 1
    %1721 = vsyncpa [#allocation5], 1
    %s1722 = scalar_lea.sflag [#allocation5], 1
    %1723 = vsyncpa %s1722, 1

</llo_original>
